<compile_context>
chip_gen: v7x
topology: tpu7x:2x2x1
jax: 0.10.0
libtpu: 0.0.40
codegen_flags: <defaults>
</compile_context>

<pallas_src>
import functools

import jax
import jax.numpy as jnp
from jax.experimental import pallas as pl
from jax.experimental.pallas import tpu as pltpu


# --------------------------------------------------------------------------
# Activation (module supports silu / relu / lrelu; default silu).
# --------------------------------------------------------------------------
def _apply_act(x, act):
    if act == "silu":
        return x * jax.nn.sigmoid(x)
    if act == "relu":
        return jnp.maximum(x, 0.0)
    if act == "lrelu":
        return jnp.where(x >= 0, x, 0.1 * x)
    raise ValueError(f"unsupported act: {act}")


# --------------------------------------------------------------------------
# Fused depthwise-conv + BN + act + pointwise-conv + BN + act kernel.
# One grid step = one (batch, row-tile) output block.
# --------------------------------------------------------------------------
def _dw_pw_kernel(x_ref, wd_ref, bd_ref, wp_ref, bp_ref, o_ref, *, ks, th, w, act):
    i = pl.program_id(1)
    c = x_ref.shape[-1]

    # Halo'd row window sliced out of the VMEM-resident padded image.
    win = x_ref[pl.ds(i * th, th + ks - 1), :, :]          # (TH + ks-1, Wp, C) f32

    # Depthwise conv: ks*ks shifted multiply-accumulates on the VPU.
    # BN scale is already folded into wd.
    wd = wd_ref[...]                                       # (ks*ks, C)
    acc = jnp.zeros((th, w, c), jnp.float32)
    for ky in range(ks):
        for kx in range(ks):
            tap_w = wd[ky * ks + kx].reshape(1, 1, c)
            acc = acc + win[ky:ky + th, kx:kx + w, :] * tap_w

    y = _apply_act(acc + bd_ref[...], act)                 # BN shift + act (f32)

    # Pointwise 1x1 conv as an MXU matmul: bf16 operands, f32 accumulation.
    lhs = y.reshape(th * w, c).astype(jnp.bfloat16)
    z = jnp.dot(lhs, wp_ref[...], preferred_element_type=jnp.float32)
    z = _apply_act(z + bp_ref[...], act)                   # BN shift + act (f32)

    o_ref[...] = z.reshape(th, w, -1)


def _pick_row_tile(h, w, cmax, budget_bytes=2 * 1024 * 1024):
    """Largest divisor of H whose (TH, W, Cmax) f32 tile fits the byte budget."""
    best = 1
    for th in range(1, h + 1):
        if h % th == 0 and th * w * cmax * 4 <= budget_bytes:
            best = th
    return best


def depthwise_forward(x_nchw, p, *, ks=3, stride=1, act="silu", eps=1e-5):
    assert stride == 1, "TODO(synk): stride > 1 not implemented"
    assert ks % 2 == 1, "odd kernel size expected"
    B, C, H, W = x_nchw.shape
    Cout = p["pw_w"].shape[1]
    pad = (ks - 1) // 2

    # Fold eval-mode BN into the conv weights (scale) + per-channel shift.
    sd = p["dw_gamma"] / jnp.sqrt(p["dw_var"] + eps)
    bd = (p["dw_beta"] - p["dw_mean"] * sd).reshape(1, C)
    wd = (p["dw_w"] * sd[:, None, None]).transpose(1, 2, 0).reshape(ks * ks, C)

    sp = p["pw_gamma"] / jnp.sqrt(p["pw_var"] + eps)
    bp = (p["pw_beta"] - p["pw_mean"] * sp).reshape(1, Cout)
    wp = (p["pw_w"] * sp[None, :]).astype(jnp.bfloat16)    # (C, Cout) bf16 MXU operand

    # NHWC + spatial padding (data movement only; all compute is in the kernel).
    x = jnp.transpose(x_nchw, (0, 2, 3, 1))                # (B, H, W, C)
    xp = jnp.pad(x, ((0, 0), (pad, pad), (pad, pad), (0, 0)))
    Hp, Wp = H + 2 * pad, W + 2 * pad

    TH = _pick_row_tile(H, W, max(C, Cout))
    nHT = H // TH

    out = pl.pallas_call(
        functools.partial(_dw_pw_kernel, ks=ks, th=TH, w=W, act=act),
        out_shape=jax.ShapeDtypeStruct((B, H, W, Cout), jnp.float32),
        grid=(B, nHT),
        in_specs=[
            # Padded image: resident in VMEM across the row-tile axis (halo source).
            pl.BlockSpec((None, Hp, Wp, C), lambda b, i: (b, 0, 0, 0)),
            pl.BlockSpec((ks * ks, C), lambda b, i: (0, 0)),
            pl.BlockSpec((1, C), lambda b, i: (0, 0)),
            pl.BlockSpec((C, Cout), lambda b, i: (0, 0)),
            pl.BlockSpec((1, Cout), lambda b, i: (0, 0)),
        ],
        out_specs=pl.BlockSpec((None, TH, W, Cout), lambda b, i: (b, i, 0, 0)),
        compiler_params=pltpu.CompilerParams(
            dimension_semantics=("parallel", "parallel"),
            vmem_limit_bytes=32 * 1024 * 1024,
        ),
    )(xp, wd, bd, wp, bp)

    return jnp.transpose(out, (0, 3, 1, 2))                # back to NCHW


# --------------------------------------------------------------------------
# Deterministic parameter init (shapes from the PyTorch __init__; eval-mode BN
# statistics randomized a little so the folding is actually exercised).
# --------------------------------------------------------------------------
def init_params(key, cin, cout, ks):
    keys = jax.random.split(key, 10)

    def u(k, shape, s=0.3):
        return jax.random.uniform(k, shape, jnp.float32, -s, s)

    p = dict(
        dw_w=u(keys[0], (cin, ks, ks)),                # depthwise filters (one per channel)
        dw_gamma=1.0 + 0.1 * jax.random.normal(keys[1], (cin,)),
        dw_beta=0.1 * jax.random.normal(keys[2], (cin,)),
        dw_mean=0.1 * jax.random.normal(keys[3], (cin,)),
        dw_var=1.0 + 0.1 * jnp.abs(jax.random.normal(keys[4], (cin,))),
        pw_w=u(keys[5], (cin, cout)),                  # pointwise weight, stored (Cin, Cout)
        pw_gamma=1.0 + 0.1 * jax.random.normal(keys[6], (cout,)),
        pw_beta=0.1 * jax.random.normal(keys[7], (cout,)),
        pw_mean=0.1 * jax.random.normal(keys[8], (cout,)),
        pw_var=1.0 + 0.1 * jnp.abs(jax.random.normal(keys[9], (cout,))),
    )
    return {k: v.astype(jnp.float32) for k, v in p.items()}


# --------------------------------------------------------------------------
# Pure-JAX reference mirroring the PyTorch forward (for validation).
# --------------------------------------------------------------------------
def _bn_ref(x_nchw, gamma, beta, mean, var, eps):
    inv = gamma / jnp.sqrt(var + eps)
    return (x_nchw - mean[None, :, None, None]) * inv[None, :, None, None] \
        + beta[None, :, None, None]


def reference_forward(x_nchw, p, *, ks=3, stride=1, act="silu", eps=1e-5):
    hp = jax.lax.Precision.HIGHEST
    C = x_nchw.shape[1]
    pad = (ks - 1) // 2

    dw_rhs = p["dw_w"][:, None, :, :]                      # (C, 1, ks, ks) OIHW
    y = jax.lax.conv_general_dilated(
        x_nchw, dw_rhs, window_strides=(stride, stride),
        padding=((pad, pad), (pad, pad)),
        dimension_numbers=("NCHW", "OIHW", "NCHW"),
        feature_group_count=C, precision=hp)
    y = _apply_act(_bn_ref(y, p["dw_gamma"], p["dw_beta"], p["dw_mean"],
                           p["dw_var"], eps), act)

    pw_rhs = p["pw_w"].T[:, :, None, None]                 # (Cout, Cin, 1, 1) OIHW
    z = jax.lax.conv_general_dilated(
        y, pw_rhs, window_strides=(1, 1), padding=((0, 0), (0, 0)),
        dimension_numbers=("NCHW", "OIHW", "NCHW"), precision=hp)
    z = _apply_act(_bn_ref(z, p["pw_gamma"], p["pw_beta"], p["pw_mean"],
                           p["pw_var"], eps), act)
    return z


if __name__ == "__main__":
    key = jax.random.PRNGKey(0)
    kx, kp = jax.random.split(key)

    B, Cin, Cout, H, W, ks = 2, 32, 64, 16, 16, 3
    x = jax.random.normal(kx, (B, Cin, H, W), jnp.float32)
    params = init_params(kp, Cin, Cout, ks)

    out = depthwise_forward(x, params, ks=ks, stride=1, act="silu")
    out = jax.block_until_ready(out)
    assert out.shape == (B, Cout, H, W)

    ref = reference_forward(x, params, ks=ks, stride=1, act="silu")
    err = float(jnp.max(jnp.abs(out - ref)))
    tol = 1e-2 * max(1.0, float(jnp.max(jnp.abs(ref))))    # bf16 MXU operand tolerance
    assert err < tol, f"max abs err {err} (tol {tol})"
    print("KERNEL_OK")
</pallas_src>

<mosaic_0001>
module attributes {stable_mosaic.version = 11 : i64} {
  func.func @_dw_pw_kernel(%arg0: i32, %arg1: i32, %arg2: memref<1x18x18x32xf32, #tpu.memory_space<vmem>>, %arg3: memref<9x32xf32, #tpu.memory_space<vmem>>, %arg4: memref<1x32xf32, #tpu.memory_space<vmem>>, %arg5: memref<32x64xbf16, #tpu.memory_space<vmem>>, %arg6: memref<1x64xf32, #tpu.memory_space<vmem>>, %arg7: memref<1x16x16x64xf32, #tpu.memory_space<vmem>>) attributes {dimension_semantics = [#tpu.dimension_semantics<parallel>, #tpu.dimension_semantics<parallel>], iteration_bounds = array<i64: 2, 1>, scalar_prefetch = 0 : i64, scratch_operands = 0 : i64, tpu.core_type = #tpu.core_type<tc>, window_params = [{transform_indices = @transform_0, window_bounds = array<i64: 1, 18, 18, 32>}, {pipeline_mode = #tpu.pipeline_mode<synchronous>, transform_indices = @transform_1, window_bounds = array<i64: 9, 32>}, {pipeline_mode = #tpu.pipeline_mode<synchronous>, transform_indices = @transform_2, window_bounds = array<i64: 1, 32>}, {pipeline_mode = #tpu.pipeline_mode<synchronous>, transform_indices = @transform_3, window_bounds = array<i64: 32, 64>}, {pipeline_mode = #tpu.pipeline_mode<synchronous>, transform_indices = @transform_4, window_bounds = array<i64: 1, 64>}, {transform_indices = @transform_5, window_bounds = array<i64: 1, 16, 16, 64>}]} {
    %c16_i32 = arith.constant 16 : i32
    %0 = arith.muli %arg1, %c16_i32 : i32
    %c0 = arith.constant 0 : index
    %1 = arith.index_cast %0 : i32 to index
    %c0_0 = arith.constant 0 : index
    %c0_1 = arith.constant 0 : index
    %2 = vector.load %arg2[%c0, %1, %c0_0, %c0_1] : memref<1x18x18x32xf32, #tpu.memory_space<vmem>>, vector<1x18x18x32xf32>
    %3 = vector.shape_cast %2 : vector<1x18x18x32xf32> to vector<18x18x32xf32>
    %c0_2 = arith.constant 0 : index
    %c0_3 = arith.constant 0 : index
    %4 = vector.load %arg3[%c0_2, %c0_3] : memref<9x32xf32, #tpu.memory_space<vmem>>, vector<9x32xf32>
    %cst = arith.constant 0.000000e+00 : f32
    %5 = vector.broadcast %cst : f32 to vector<16x16x32xf32>
    %6 = vector.extract_strided_slice %4 {offsets = [0, 0], sizes = [1, 32], strides = [1, 1]} : vector<9x32xf32> to vector<1x32xf32>
    %7 = vector.shape_cast %6 : vector<1x32xf32> to vector<32xf32>
    %8 = vector.shape_cast %7 : vector<32xf32> to vector<1x1x32xf32>
    %9 = vector.extract_strided_slice %3 {offsets = [0, 0, 0], sizes = [16, 16, 32], strides = [1, 1, 1]} : vector<18x18x32xf32> to vector<16x16x32xf32>
    %10 = vector.broadcast %8 : vector<1x1x32xf32> to vector<16x16x32xf32>
    %11 = arith.mulf %9, %10 : vector<16x16x32xf32>
    %12 = arith.addf %5, %11 : vector<16x16x32xf32>
    %13 = vector.extract_strided_slice %4 {offsets = [1, 0], sizes = [1, 32], strides = [1, 1]} : vector<9x32xf32> to vector<1x32xf32>
    %14 = vector.shape_cast %13 : vector<1x32xf32> to vector<32xf32>
    %15 = vector.shape_cast %14 : vector<32xf32> to vector<1x1x32xf32>
    %16 = vector.extract_strided_slice %3 {offsets = [0, 1, 0], sizes = [16, 16, 32], strides = [1, 1, 1]} : vector<18x18x32xf32> to vector<16x16x32xf32>
    %17 = vector.broadcast %15 : vector<1x1x32xf32> to vector<16x16x32xf32>
    %18 = arith.mulf %16, %17 : vector<16x16x32xf32>
    %19 = arith.addf %12, %18 : vector<16x16x32xf32>
    %20 = vector.extract_strided_slice %4 {offsets = [2, 0], sizes = [1, 32], strides = [1, 1]} : vector<9x32xf32> to vector<1x32xf32>
    %21 = vector.shape_cast %20 : vector<1x32xf32> to vector<32xf32>
    %22 = vector.shape_cast %21 : vector<32xf32> to vector<1x1x32xf32>
    %23 = vector.extract_strided_slice %3 {offsets = [0, 2, 0], sizes = [16, 16, 32], strides = [1, 1, 1]} : vector<18x18x32xf32> to vector<16x16x32xf32>
    %24 = vector.broadcast %22 : vector<1x1x32xf32> to vector<16x16x32xf32>
    %25 = arith.mulf %23, %24 : vector<16x16x32xf32>
    %26 = arith.addf %19, %25 : vector<16x16x32xf32>
    %27 = vector.extract_strided_slice %4 {offsets = [3, 0], sizes = [1, 32], strides = [1, 1]} : vector<9x32xf32> to vector<1x32xf32>
    %28 = vector.shape_cast %27 : vector<1x32xf32> to vector<32xf32>
    %29 = vector.shape_cast %28 : vector<32xf32> to vector<1x1x32xf32>
    %30 = vector.extract_strided_slice %3 {offsets = [1, 0, 0], sizes = [16, 16, 32], strides = [1, 1, 1]} : vector<18x18x32xf32> to vector<16x16x32xf32>
    %31 = vector.broadcast %29 : vector<1x1x32xf32> to vector<16x16x32xf32>
    %32 = arith.mulf %30, %31 : vector<16x16x32xf32>
    %33 = arith.addf %26, %32 : vector<16x16x32xf32>
    %34 = vector.extract_strided_slice %4 {offsets = [4, 0], sizes = [1, 32], strides = [1, 1]} : vector<9x32xf32> to vector<1x32xf32>
    %35 = vector.shape_cast %34 : vector<1x32xf32> to vector<32xf32>
    %36 = vector.shape_cast %35 : vector<32xf32> to vector<1x1x32xf32>
    %37 = vector.extract_strided_slice %3 {offsets = [1, 1, 0], sizes = [16, 16, 32], strides = [1, 1, 1]} : vector<18x18x32xf32> to vector<16x16x32xf32>
    %38 = vector.broadcast %36 : vector<1x1x32xf32> to vector<16x16x32xf32>
    %39 = arith.mulf %37, %38 : vector<16x16x32xf32>
    %40 = arith.addf %33, %39 : vector<16x16x32xf32>
    %41 = vector.extract_strided_slice %4 {offsets = [5, 0], sizes = [1, 32], strides = [1, 1]} : vector<9x32xf32> to vector<1x32xf32>
    %42 = vector.shape_cast %41 : vector<1x32xf32> to vector<32xf32>
    %43 = vector.shape_cast %42 : vector<32xf32> to vector<1x1x32xf32>
    %44 = vector.extract_strided_slice %3 {offsets = [1, 2, 0], sizes = [16, 16, 32], strides = [1, 1, 1]} : vector<18x18x32xf32> to vector<16x16x32xf32>
    %45 = vector.broadcast %43 : vector<1x1x32xf32> to vector<16x16x32xf32>
    %46 = arith.mulf %44, %45 : vector<16x16x32xf32>
    %47 = arith.addf %40, %46 : vector<16x16x32xf32>
    %48 = vector.extract_strided_slice %4 {offsets = [6, 0], sizes = [1, 32], strides = [1, 1]} : vector<9x32xf32> to vector<1x32xf32>
    %49 = vector.shape_cast %48 : vector<1x32xf32> to vector<32xf32>
    %50 = vector.shape_cast %49 : vector<32xf32> to vector<1x1x32xf32>
    %51 = vector.extract_strided_slice %3 {offsets = [2, 0, 0], sizes = [16, 16, 32], strides = [1, 1, 1]} : vector<18x18x32xf32> to vector<16x16x32xf32>
    %52 = vector.broadcast %50 : vector<1x1x32xf32> to vector<16x16x32xf32>
    %53 = arith.mulf %51, %52 : vector<16x16x32xf32>
    %54 = arith.addf %47, %53 : vector<16x16x32xf32>
    %55 = vector.extract_strided_slice %4 {offsets = [7, 0], sizes = [1, 32], strides = [1, 1]} : vector<9x32xf32> to vector<1x32xf32>
    %56 = vector.shape_cast %55 : vector<1x32xf32> to vector<32xf32>
    %57 = vector.shape_cast %56 : vector<32xf32> to vector<1x1x32xf32>
    %58 = vector.extract_strided_slice %3 {offsets = [2, 1, 0], sizes = [16, 16, 32], strides = [1, 1, 1]} : vector<18x18x32xf32> to vector<16x16x32xf32>
    %59 = vector.broadcast %57 : vector<1x1x32xf32> to vector<16x16x32xf32>
    %60 = arith.mulf %58, %59 : vector<16x16x32xf32>
    %61 = arith.addf %54, %60 : vector<16x16x32xf32>
    %62 = vector.extract_strided_slice %4 {offsets = [8, 0], sizes = [1, 32], strides = [1, 1]} : vector<9x32xf32> to vector<1x32xf32>
    %63 = vector.shape_cast %62 : vector<1x32xf32> to vector<32xf32>
    %64 = vector.shape_cast %63 : vector<32xf32> to vector<1x1x32xf32>
    %65 = vector.extract_strided_slice %3 {offsets = [2, 2, 0], sizes = [16, 16, 32], strides = [1, 1, 1]} : vector<18x18x32xf32> to vector<16x16x32xf32>
    %66 = vector.broadcast %64 : vector<1x1x32xf32> to vector<16x16x32xf32>
    %67 = arith.mulf %65, %66 : vector<16x16x32xf32>
    %68 = arith.addf %61, %67 : vector<16x16x32xf32>
    %c0_4 = arith.constant 0 : index
    %c0_5 = arith.constant 0 : index
    %69 = vector.load %arg4[%c0_4, %c0_5] : memref<1x32xf32, #tpu.memory_space<vmem>>, vector<1x32xf32>
    %70 = vector.shape_cast %69 : vector<1x32xf32> to vector<1x1x32xf32>
    %71 = vector.broadcast %70 : vector<1x1x32xf32> to vector<16x16x32xf32>
    %72 = arith.addf %68, %71 : vector<16x16x32xf32>
    %73 = arith.negf %72 : vector<16x16x32xf32>
    %74 = math.exp %73 : vector<16x16x32xf32>
    %cst_6 = arith.constant 1.000000e+00 : f32
    %75 = vector.broadcast %cst_6 : f32 to vector<16x16x32xf32>
    %76 = arith.addf %75, %74 : vector<16x16x32xf32>
    %77 = arith.divf %75, %76 : vector<16x16x32xf32>
    %78 = arith.mulf %72, %77 : vector<16x16x32xf32>
    %79 = vector.shape_cast %78 : vector<16x16x32xf32> to vector<256x32xf32>
    %80 = arith.truncf %79 : vector<256x32xf32> to vector<256x32xbf16>
    %c0_7 = arith.constant 0 : index
    %c0_8 = arith.constant 0 : index
    %81 = vector.load %arg5[%c0_7, %c0_8] : memref<32x64xbf16, #tpu.memory_space<vmem>>, vector<32x64xbf16>
    %cst_9 = arith.constant dense<0.000000e+00> : vector<256x64xf32>
    %82 = tpu.matmul %80, %81, %cst_9 {dimension_numbers = #tpu.dot_dimension_numbers<[1], [0], [0], [1], [0, 0, 1, 1], [], []>} : vector<256x32xbf16>, vector<32x64xbf16>, vector<256x64xf32> -> vector<256x64xf32>
    %c0_10 = arith.constant 0 : index
    %c0_11 = arith.constant 0 : index
    %83 = vector.load %arg6[%c0_10, %c0_11] : memref<1x64xf32, #tpu.memory_space<vmem>>, vector<1x64xf32>
    %84 = vector.broadcast %83 : vector<1x64xf32> to vector<256x64xf32>
    %85 = arith.addf %82, %84 : vector<256x64xf32>
    %86 = arith.negf %85 : vector<256x64xf32>
    %87 = math.exp %86 : vector<256x64xf32>
    %cst_12 = arith.constant 1.000000e+00 : f32
    %88 = vector.broadcast %cst_12 : f32 to vector<256x64xf32>
    %89 = arith.addf %88, %87 : vector<256x64xf32>
    %90 = arith.divf %88, %89 : vector<256x64xf32>
    %91 = arith.mulf %85, %90 : vector<256x64xf32>
    %92 = vector.shape_cast %91 : vector<256x64xf32> to vector<16x16x64xf32>
    %c0_13 = arith.constant 0 : index
    %c0_14 = arith.constant 0 : index
    %c0_15 = arith.constant 0 : index
    %c0_16 = arith.constant 0 : index
    %93 = vector.load %arg7[%c0_13, %c0_14, %c0_15, %c0_16] : memref<1x16x16x64xf32, #tpu.memory_space<vmem>>, vector<1x16x16x64xf32>
    %94 = vector.shape_cast %93 : vector<1x16x16x64xf32> to vector<16x16x64xf32>
    %95 = vector.shape_cast %92 : vector<16x16x64xf32> to vector<1x16x16x64xf32>
    tpu.vector_store %arg7[%c0_13, %c0_14, %c0_15, %c0_16], %95 {strides = array<i32>} : memref<1x16x16x64xf32, #tpu.memory_space<vmem>>, vector<1x16x16x64xf32>,
    return
  }
  func.func @transform_0(%arg0: i32, %arg1: i32) -> (i32, i32, i32, i32) {
    %c0_i32 = arith.constant 0 : i32
    %c0_i32_0 = arith.constant 0 : i32
    %c0_i32_1 = arith.constant 0 : i32
    %c0_i32_2 = arith.constant 0 : i32
    return %arg0, %c0_i32, %c0_i32_0, %c0_i32_1 : i32, i32, i32, i32
  }
  func.func @transform_1(%arg0: i32, %arg1: i32) -> (i32, i32) {
    %c0_i32 = arith.constant 0 : i32
    %c0_i32_0 = arith.constant 0 : i32
    %c0_i32_1 = arith.constant 0 : i32
    return %c0_i32, %c0_i32_0 : i32, i32
  }
  func.func @transform_2(%arg0: i32, %arg1: i32) -> (i32, i32) {
    %c0_i32 = arith.constant 0 : i32
    %c0_i32_0 = arith.constant 0 : i32
    %c0_i32_1 = arith.constant 0 : i32
    return %c0_i32, %c0_i32_0 : i32, i32
  }
  func.func @transform_3(%arg0: i32, %arg1: i32) -> (i32, i32) {
    %c0_i32 = arith.constant 0 : i32
    %c0_i32_0 = arith.constant 0 : i32
    %c0_i32_1 = arith.constant 0 : i32
    return %c0_i32, %c0_i32_0 : i32, i32
  }
  func.func @transform_4(%arg0: i32, %arg1: i32) -> (i32, i32) {
    %c0_i32 = arith.constant 0 : i32
    %c0_i32_0 = arith.constant 0 : i32
    %c0_i32_1 = arith.constant 0 : i32
    return %c0_i32, %c0_i32_0 : i32, i32
  }
  func.func @transform_5(%arg0: i32, %arg1: i32) -> (i32, i32, i32, i32) {
    %c0_i32 = arith.constant 0 : i32
    %c0_i32_0 = arith.constant 0 : i32
    %c0_i32_1 = arith.constant 0 : i32
    return %arg0, %arg1, %c0_i32, %c0_i32_0 : i32, i32, i32, i32
  }
}

</mosaic_0001>

<llo_original>
// kernel: tpu_custom_call.1
$region0: #{tpu_custom_call.1}
  #allocation0 [shape = 'u32[]', space=smem, size = 0x4, offset = 0x4, fixed_abs, tag = 'smem constant byte address 0x4 - core index']
  #allocation1 [shape = 'u32[144,128]{1,0:T(1,128)}', space=vmem, size = 0x12000, scoped, tag = 'internal scratch']
  %s0 = inlined_call_operand.vmem [shape: f32[2,18,18,32], index: 0, kind: input, shape index: {}]
  %s1 = inlined_call_operand.vmem [shape: f32[9,32], index: 1, kind: input, shape index: {}]
  %s2 = inlined_call_operand.vmem [shape: f32[1,32], index: 2, kind: input, shape index: {}]
  %s3 = inlined_call_operand.vmem [shape: bf16[32,64], index: 3, kind: input, shape index: {}]
  %s4 = inlined_call_operand.vmem [shape: f32[1,64], index: 4, kind: input, shape index: {}]
  %s5 = inlined_call_operand.hbm [shape: f32[2,16,16,64], index: 5, kind: output, shape index: {}]
  %s6 = sld [smem:[#allocation0]]
  $region53: #{tpu_custom_call.1} parent=0
    _
  %s8 = ssub.s32 1, %s6
  %s9 = scalar_select 0, %s8, %s6
  $region1: #{tpu_custom_call.1} parent=0
    #allocation2 [shape = 'u8[262144]{0}', space=vmem, size = 0x40000, scoped, tag = 'output window, operand 0']
    #allocation3 [shape = 's32[2]{0}', space=sflag, size = 0x8, scoped, tag = 'scoped memory for tpu_custom_call.1']
    %10 = vsyncpa [#allocation3], 0
    %s11 = scalar_lea.sflag [#allocation3], 1
    %12 = vsyncpa %s11, 0
    loop: start=0, step=1, limit=4
    $region2: #{tpu_custom_call.1} parent=1 // loop_pre_header
      _
    $region3: #{tpu_custom_call.1} parent=1 // loop_header
      %s14 = sphi 0, %s18
      %p15 = scmp.ge.s32.totalorder %s14, 4
      %s21 = sphi 0, %s33
      %s22 = sphi 0, %s29
      %s23 = sphi 0, %s21
      %s24 = sphi 0, %s22
      %s25 = sphi 0, %s23
      %s26 = sphi 0, %s24
      %s36 = sphi 0, %s38
      %s39 = sphi 0, %s36
      %s40 = sphi 0, %s39
      %s56 = sphi 0, %s40
      %s60 = sphi 0, %s60
      %s62 = sphi 0, %s60
      %s63 = sphi 0, %s62
      %s77 = sphi 0, %s63
      %s81 = sphi 0, %s81
      %s83 = sphi 0, %s81
      %s84 = sphi 0, %s83
      %s98 = sphi 0, %s84
      %s102 = sphi 0, %s102
      %s104 = sphi 0, %s102
      %s105 = sphi 0, %s104
      %s119 = sphi 0, %s105
      %s123 = sphi 0, %s123
      %s125 = sphi 0, %s123
      %s126 = sphi 0, %s125
      %s140 = sphi 0, %s126
      %s148 = sphi 0, %s150
      %s151 = sphi 0, %s148
      %s152 = sphi 0, %s151
      %s168 = sphi 0, %s152
    $region4: #{tpu_custom_call.1} parent=1 // loop_header_branch
      %17 = sbr.rel (%p15) target = $region8
    $region5: #{tpu_custom_call.1} parent=1 // loop_body
      %s19 = ssub.s32 %s14, 1
      %s20 = ssub.s32 %s14, 2
      %s27 = sadd.s32 1, %s22
      %p28 = scmp.ge.s32.totalorder %s27, 1
      %s29 = scalar_select %p28, 0, %s27
      %s30 = sadd.s32 1, %s21
      %s31 = scalar_select %p28, %s30, %s21
      %p32 = scmp.ge.s32.totalorder %s31, 2
      %s33 = scalar_select %p32, 0, %s31
      %s34 = ssub.s32 %s21, %s33
      %p35 = scmp.eq.s32.totalorder %s34, 0
      %s37 = sadd.s32 %s36, 1
      %s38 = scalar_select %p35, %s36, %s37
      %p41 = pneg %p35
      %p42 = scmp.eq.s32.totalorder %s14, 1
      %p43 = por %p41, %p42
      %p44 = scmp.ne.s32.totalorder %s36, %s39
      %p45 = scmp.eq.s32.totalorder %s14, 0
      %p46 = por %p44, %p45
      %p47 = scmp.ne.s32.totalorder %s36, %s39
      %p48 = scmp.eq.s32.totalorder %s19, 1
      %p49 = por %p47, %p48
      %p50 = scmp.ne.s32.totalorder %s39, %s40
      %p51 = scmp.eq.s32.totalorder %s19, 0
      %p52 = por %p50, %p51
      %p53 = scmp.ne.s32.totalorder %s39, %s40
      %p54 = scmp.eq.s32.totalorder %s20, 1
      %p55 = por %p53, %p54
      %p57 = scmp.ne.s32.totalorder %s40, %s56
      %p58 = scmp.eq.s32.totalorder %s20, 0
      %p59 = por %p57, %p58
      %s61 = sadd.s32 %s60, 1
      %p64 = scmp.eq.s32.totalorder %s14, 1
      %p65 = scmp.ne.s32.totalorder %s60, %s62
      %p66 = scmp.eq.s32.totalorder %s14, 0
      %p67 = por %p65, %p66
      %p68 = scmp.ne.s32.totalorder %s60, %s62
      %p69 = scmp.eq.s32.totalorder %s19, 1
      %p70 = por %p68, %p69
      %p71 = scmp.ne.s32.totalorder %s62, %s63
      %p72 = scmp.eq.s32.totalorder %s19, 0
      %p73 = por %p71, %p72
      %p74 = scmp.ne.s32.totalorder %s62, %s63
      %p75 = scmp.eq.s32.totalorder %s20, 1
      %p76 = por %p74, %p75
      %p78 = scmp.ne.s32.totalorder %s63, %s77
      %p79 = scmp.eq.s32.totalorder %s20, 0
      %p80 = por %p78, %p79
      %s82 = sadd.s32 %s81, 1
      %p85 = scmp.eq.s32.totalorder %s14, 1
      %p86 = scmp.ne.s32.totalorder %s81, %s83
      %p87 = scmp.eq.s32.totalorder %s14, 0
      %p88 = por %p86, %p87
      %p89 = scmp.ne.s32.totalorder %s81, %s83
      %p90 = scmp.eq.s32.totalorder %s19, 1
      %p91 = por %p89, %p90
      %p92 = scmp.ne.s32.totalorder %s83, %s84
      %p93 = scmp.eq.s32.totalorder %s19, 0
      %p94 = por %p92, %p93
      %p95 = scmp.ne.s32.totalorder %s83, %s84
      %p96 = scmp.eq.s32.totalorder %s20, 1
      %p97 = por %p95, %p96
      %p99 = scmp.ne.s32.totalorder %s84, %s98
      %p100 = scmp.eq.s32.totalorder %s20, 0
      %p101 = por %p99, %p100
      %s103 = sadd.s32 %s102, 1
      %p106 = scmp.eq.s32.totalorder %s14, 1
      %p107 = scmp.ne.s32.totalorder %s102, %s104
      %p108 = scmp.eq.s32.totalorder %s14, 0
      %p109 = por %p107, %p108
      %p110 = scmp.ne.s32.totalorder %s102, %s104
      %p111 = scmp.eq.s32.totalorder %s19, 1
      %p112 = por %p110, %p111
      %p113 = scmp.ne.s32.totalorder %s104, %s105
      %p114 = scmp.eq.s32.totalorder %s19, 0
      %p115 = por %p113, %p114
      %p116 = scmp.ne.s32.totalorder %s104, %s105
      %p117 = scmp.eq.s32.totalorder %s20, 1
      %p118 = por %p116, %p117
      %p120 = scmp.ne.s32.totalorder %s105, %s119
      %p121 = scmp.eq.s32.totalorder %s20, 0
      %p122 = por %p120, %p121
      %s124 = sadd.s32 %s123, 1
      %p127 = scmp.eq.s32.totalorder %s14, 1
      %p128 = scmp.ne.s32.totalorder %s123, %s125
      %p129 = scmp.eq.s32.totalorder %s14, 0
      %p130 = por %p128, %p129
      %p131 = scmp.ne.s32.totalorder %s123, %s125
      %p132 = scmp.eq.s32.totalorder %s19, 1
      %p133 = por %p131, %p132
      %p134 = scmp.ne.s32.totalorder %s125, %s126
      %p135 = scmp.eq.s32.totalorder %s19, 0
      %p136 = por %p134, %p135
      %p137 = scmp.ne.s32.totalorder %s125, %s126
      %p138 = scmp.eq.s32.totalorder %s20, 1
      %p139 = por %p137, %p138
      %p141 = scmp.ne.s32.totalorder %s126, %s140
      %p142 = scmp.eq.s32.totalorder %s20, 0
      %p143 = por %p141, %p142
      %s144 = ssub.s32 %s21, %s33
      %s145 = ssub.s32 %s22, %s29
      %s146 = sor.u32 %s144, %s145
      %p147 = scmp.eq.s32.totalorder %s146, 0
      %s149 = sadd.s32 %s148, 1
      %s150 = scalar_select %p147, %s148, %s149
      %p153 = pneg %p147
      %p154 = scmp.eq.s32.totalorder %s14, 1
      %p155 = por %p153, %p154
      %p156 = scmp.ne.s32.totalorder %s148, %s151
      %p157 = scmp.eq.s32.totalorder %s14, 0
      %p158 = por %p156, %p157
      %p159 = scmp.ne.s32.totalorder %s148, %s151
      %p160 = scmp.eq.s32.totalorder %s19, 1
      %p161 = por %p159, %p160
      %p162 = scmp.ne.s32.totalorder %s151, %s152
      %p163 = scmp.eq.s32.totalorder %s19, 0
      %p164 = por %p162, %p163
      %p165 = scmp.ne.s32.totalorder %s151, %s152
      %p166 = scmp.eq.s32.totalorder %s20, 1
      %p167 = por %p165, %p166
      %p169 = scmp.ne.s32.totalorder %s152, %s168
      %p170 = scmp.eq.s32.totalorder %s20, 0
      %p171 = por %p169, %p170
      %p172 = scmp.le.s32.totalorder 1, %s14
      %p173 = scmp.lt.s32.totalorder %s14, 3
      %p174 = pnand %p172, %p173
      %p175 = pneg %p174
      // Predicated region
      $region9: #{tpu_custom_call.1} parent=5 // pred_check
        _
      $region10: #{tpu_custom_call.1} parent=5 // pred_check_branch
        %177 = sbr.rel (%p174) target = $region12
      $region11: #{tpu_custom_call.1} parent=5 // pred_region
        %s178 = ssub.s32 %s14, 1
        // Predicated region
        $region13: #{tpu_custom_call.1} parent=11 // pred_check
          %p179 = pneg %p73
        $region14: #{tpu_custom_call.1} parent=11 // pred_check_branch
          %181 = sbr.rel (%p179) target = $region16
        $region15: #{tpu_custom_call.1} parent=11 // pred_region
          _
        $region16: #{tpu_custom_call.1} parent=11 // pred_fallthru
          _
        // Predicated region
        $region17: #{tpu_custom_call.1} parent=11 // pred_check
          %p182 = pneg %p94
        $region18: #{tpu_custom_call.1} parent=11 // pred_check_branch
          %184 = sbr.rel (%p182) target = $region20
        $region19: #{tpu_custom_call.1} parent=11 // pred_region
          _
        $region20: #{tpu_custom_call.1} parent=11 // pred_fallthru
          _
        // Predicated region
        $region21: #{tpu_custom_call.1} parent=11 // pred_check
          %p185 = pneg %p115
        $region22: #{tpu_custom_call.1} parent=11 // pred_check_branch
          %187 = sbr.rel (%p185) target = $region24
        $region23: #{tpu_custom_call.1} parent=11 // pred_region
          _
        $region24: #{tpu_custom_call.1} parent=11 // pred_fallthru
          _
        // Predicated region
        $region25: #{tpu_custom_call.1} parent=11 // pred_check
          %p188 = pneg %p136
        $region26: #{tpu_custom_call.1} parent=11 // pred_check_branch
          %190 = sbr.rel (%p188) target = $region28
        $region27: #{tpu_custom_call.1} parent=11 // pred_region
          _
        $region28: #{tpu_custom_call.1} parent=11 // pred_fallthru
          _
      $region12: #{tpu_custom_call.1} parent=5 // pred_fallthru
        _
      %p191 = scmp.lt.s32.totalorder %s14, 2
      // Predicated region
      $region29: #{tpu_custom_call.1} parent=5 // pred_check
        %p192 = pneg %p191
      $region30: #{tpu_custom_call.1} parent=5 // pred_check_branch
        %194 = sbr.rel (%p192) target = $region32
      $region31: #{tpu_custom_call.1} parent=5 // pred_region
        // Predicated region
        $region33: #{tpu_custom_call.1} parent=31 // pred_check
          %p195 = pneg %p46
        $region34: #{tpu_custom_call.1} parent=31 // pred_check_branch
          %197 = sbr.rel (%p195) target = $region36
        $region35: #{tpu_custom_call.1} parent=31 // pred_region
          %p198 = scmp.lt.s32.totalorder %s21, 1
          %s199 = scalar_select %p198, %s21, 1
          %s200 = smul.addr %s199, 54
          %s201 = smul.addr %s200, 8
          %s202 = scalar_lea.vmem %s0, %s201
        $region36: #{tpu_custom_call.1} parent=31 // pred_fallthru
          _
      $region32: #{tpu_custom_call.1} parent=5 // pred_fallthru
        _
      %p203 = scmp.le.s32.totalorder 1, %s14
      %p204 = scmp.lt.s32.totalorder %s14, 3
      %p205 = pnand %p203, %p204
      %p206 = pneg %p205
      // Predicated region
      $region37: #{tpu_custom_call.1} parent=5 // pred_check
        _
      $region38: #{tpu_custom_call.1} parent=5 // pred_check_branch
        %208 = sbr.rel (%p205) target = $region40
      $region39: #{tpu_custom_call.1} parent=5 // pred_region
        %s209 = ssub.s32 %s14, 1
        %p210 = scmp.lt.s32.totalorder %s23, 1
        %s211 = scalar_select %p210, %s23, 1
        %s212 = smul.addr %s211, 54
        %s213 = smul.addr %s212, 8
        %s214 = scalar_lea.vmem %s0, %s213
        %p215 = pneg %p52
        %p216 = pneg %p49
        %p217 = pneg %p73
        %p218 = pneg %p70
        %p219 = pneg %p94
        %p220 = pneg %p91
        %p221 = pneg %p115
        %p222 = pneg %p112
        %p223 = pneg %p136
        %p224 = pneg %p133
        %p225 = pneg %p164
        %p226 = pneg %p161
        %s227 = sand.u32 %s151, 1
        %s228 = scalar_lea.sflag [#allocation3], %s227
        %s229 = sand.u32 %s151, 1
        %s230 = smul.addr %s229, 256
        %s231 = scalar_lea.vmem [#allocation2], %s230
        %p232 = scmp.lt.s32.totalorder %s23, 1
        %s233 = scalar_select %p232, %s23, 1
        %s234 = smul.addr %s233, 54
        %s235 = smul.addr %s234, 8
        %s236 = scalar_lea.vmem %s0, %s235
        %s237 = smul.u32 16, %s24
        %s239 = smul.u32 %s24, 16
        %s240 = smul.u32 %s239, 24
        %s241 = scalar_lea.vmem %s236, %s240
        %v242 = vld [vmem:[%s241] sm:$0xff]
        %v243 = vld [vmem:[%s241 + $0x8] sm:$0xff]
        %v244 = vld [vmem:[%s241 + $0x10] sm:$0x3]
        %v245 = vld [vmem:[%s241 + $0x18] sm:$0xff]
        %v246 = vld [vmem:[%s241 + $0x20] sm:$0xff]
        %v247 = vld [vmem:[%s241 + $0x28] sm:$0x3]
        %v248 = vld [vmem:[%s241 + $0x30] sm:$0xff]
        %v249 = vld [vmem:[%s241 + $0x38] sm:$0xff]
        %v250 = vld [vmem:[%s241 + $0x40] sm:$0x3]
        %v251 = vld [vmem:[%s241 + $0x48] sm:$0xff]
        %v252 = vld [vmem:[%s241 + $0x50] sm:$0xff]
        %v253 = vld [vmem:[%s241 + $0x58] sm:$0x3]
        %v254 = vld [vmem:[%s241 + $0x60] sm:$0xff]
        %v255 = vld [vmem:[%s241 + $0x68] sm:$0xff]
        %v256 = vld [vmem:[%s241 + $0x70] sm:$0x3]
        %v257 = vld [vmem:[%s241 + $0x78] sm:$0xff]
        %v258 = vld [vmem:[%s241 + $0x80] sm:$0xff]
        %v259 = vld [vmem:[%s241 + $0x88] sm:$0x3]
        %v260 = vld [vmem:[%s241 + $0x90] sm:$0xff]
        %v261 = vld [vmem:[%s241 + $0x98] sm:$0xff]
        %v262 = vld [vmem:[%s241 + $0xa0] sm:$0x3]
        %v263 = vld [vmem:[%s241 + $0xa8] sm:$0xff]
        %v264 = vld [vmem:[%s241 + $0xb0] sm:$0xff]
        %v265 = vld [vmem:[%s241 + $0xb8] sm:$0x3]
        %v266 = vld [vmem:[%s241 + $0xc0] sm:$0xff]
        %v267 = vld [vmem:[%s241 + $0xc8] sm:$0xff]
        %v268 = vld [vmem:[%s241 + $0xd0] sm:$0x3]
        %v269 = vld [vmem:[%s241 + $0xd8] sm:$0xff]
        %v270 = vld [vmem:[%s241 + $0xe0] sm:$0xff]
        %v271 = vld [vmem:[%s241 + $0xe8] sm:$0x3]
        %v272 = vld [vmem:[%s241 + $0xf0] sm:$0xff]
        %v273 = vld [vmem:[%s241 + $0xf8] sm:$0xff]
        %v274 = vld [vmem:[%s241 + $0x100] sm:$0x3]
        %v275 = vld [vmem:[%s241 + $0x108] sm:$0xff]
        %v276 = vld [vmem:[%s241 + $0x110] sm:$0xff]
        %v277 = vld [vmem:[%s241 + $0x118] sm:$0x3]
        %v278 = vld [vmem:[%s241 + $0x120] sm:$0xff]
        %v279 = vld [vmem:[%s241 + $0x128] sm:$0xff]
        %v280 = vld [vmem:[%s241 + $0x130] sm:$0x3]
        %v281 = vld [vmem:[%s241 + $0x138] sm:$0xff]
        %v282 = vld [vmem:[%s241 + $0x140] sm:$0xff]
        %v283 = vld [vmem:[%s241 + $0x148] sm:$0x3]
        %v284 = vld [vmem:[%s241 + $0x150] sm:$0xff]
        %v285 = vld [vmem:[%s241 + $0x158] sm:$0xff]
        %v286 = vld [vmem:[%s241 + $0x160] sm:$0x3]
        %v287 = vld [vmem:[%s241 + $0x168] sm:$0xff]
        %v288 = vld [vmem:[%s241 + $0x170] sm:$0xff]
        %v289 = vld [vmem:[%s241 + $0x178] sm:$0x3]
        %v290 = vld [vmem:[%s241 + $0x180] sm:$0xff]
        %v291 = vld [vmem:[%s241 + $0x188] sm:$0xff]
        %v292 = vld [vmem:[%s241 + $0x190] sm:$0x3]
        %v293 = vld [vmem:[%s241 + $0x198] sm:$0xff]
        %v294 = vld [vmem:[%s241 + $0x1a0] sm:$0xff]
        %v295 = vld [vmem:[%s241 + $0x1a8] sm:$0x3]
        %v296 = vld [vmem:[%s1] sm:$0xff]
        %v297 = vld [vmem:[%s1 + $0x8] sm:$0x1]
        %v298 = vlaneseq
        %v299 = vshrl.u32 %v298, 7
        %v300 = vsub.s32 0, %v299
        %v301 = vrot.slane %v296, %v300
        %v302 = vmul.f32 %v242, %v301
        %v303 = vmul.f32 %v243, %v301
        %v304 = vmul.f32 %v245, %v301
        %v305 = vmul.f32 %v246, %v301
        %v306 = vmul.f32 %v248, %v301
        %v307 = vmul.f32 %v249, %v301
        %v308 = vmul.f32 %v251, %v301
        %v309 = vmul.f32 %v252, %v301
        %v310 = vmul.f32 %v254, %v301
        %v311 = vmul.f32 %v255, %v301
        %v312 = vmul.f32 %v257, %v301
        %v313 = vmul.f32 %v258, %v301
        %v314 = vmul.f32 %v260, %v301
        %v315 = vmul.f32 %v261, %v301
        %v316 = vmul.f32 %v263, %v301
        %v317 = vmul.f32 %v264, %v301
        %v318 = vmul.f32 %v266, %v301
        %v319 = vmul.f32 %v267, %v301
        %v320 = vmul.f32 %v269, %v301
        %v321 = vmul.f32 %v270, %v301
        %v322 = vmul.f32 %v272, %v301
        %v323 = vmul.f32 %v273, %v301
        %v324 = vmul.f32 %v275, %v301
        %v325 = vmul.f32 %v276, %v301
        %v326 = vmul.f32 %v278, %v301
        %v327 = vmul.f32 %v279, %v301
        %v328 = vmul.f32 %v281, %v301
        %v329 = vmul.f32 %v282, %v301
        %v330 = vmul.f32 %v284, %v301
        %v331 = vmul.f32 %v285, %v301
        %v332 = vmul.f32 %v287, %v301
        %v333 = vmul.f32 %v288, %v301
        %v334 = vadd.f32 %v302, 0.0
        %v335 = vadd.f32 %v303, 0.0
        %v336 = vadd.f32 %v304, 0.0
        %v337 = vadd.f32 %v305, 0.0
        %v338 = vadd.f32 %v306, 0.0
        %v339 = vadd.f32 %v307, 0.0
        %v340 = vadd.f32 %v308, 0.0
        %v341 = vadd.f32 %v309, 0.0
        %v342 = vadd.f32 %v310, 0.0
        %v343 = vadd.f32 %v311, 0.0
        %v344 = vadd.f32 %v312, 0.0
        %v345 = vadd.f32 %v313, 0.0
        %v346 = vadd.f32 %v314, 0.0
        %v347 = vadd.f32 %v315, 0.0
        %v348 = vadd.f32 %v316, 0.0
        %v349 = vadd.f32 %v317, 0.0
        %v350 = vadd.f32 %v318, 0.0
        %v351 = vadd.f32 %v319, 0.0
        %v352 = vadd.f32 %v320, 0.0
        %v353 = vadd.f32 %v321, 0.0
        %v354 = vadd.f32 %v322, 0.0
        %v355 = vadd.f32 %v323, 0.0
        %v356 = vadd.f32 %v324, 0.0
        %v357 = vadd.f32 %v325, 0.0
        %v358 = vadd.f32 %v326, 0.0
        %v359 = vadd.f32 %v327, 0.0
        %v360 = vadd.f32 %v328, 0.0
        %v361 = vadd.f32 %v329, 0.0
        %v362 = vadd.f32 %v330, 0.0
        %v363 = vadd.f32 %v331, 0.0
        %v364 = vadd.f32 %v332, 0.0
        %v365 = vadd.f32 %v333, 0.0
        %v366 = vlaneseq
        %v367 = vshrl.u32 %v366, 7
        %v368 = vsub.s32 1, %v367
        %v369 = vrot.slane %v296, %v368
        %v370 = vmul.f32 %v242, %v369
        %v371 = vmul.f32 %v243, %v369
        %v372 = vmul.f32 %v244, %v369
        %v373 = vmul.f32 %v245, %v369
        %v374 = vmul.f32 %v246, %v369
        %v375 = vmul.f32 %v247, %v369
        %v376 = vmul.f32 %v248, %v369
        %v377 = vmul.f32 %v249, %v369
        %v378 = vmul.f32 %v250, %v369
        %v379 = vmul.f32 %v251, %v369
        %v380 = vmul.f32 %v252, %v369
        %v381 = vmul.f32 %v253, %v369
        %v382 = vmul.f32 %v254, %v369
        %v383 = vmul.f32 %v255, %v369
        %v384 = vmul.f32 %v256, %v369
        %v385 = vmul.f32 %v257, %v369
        %v386 = vmul.f32 %v258, %v369
        %v387 = vmul.f32 %v259, %v369
        %v388 = vmul.f32 %v260, %v369
        %v389 = vmul.f32 %v261, %v369
        %v390 = vmul.f32 %v262, %v369
        %v391 = vmul.f32 %v263, %v369
        %v392 = vmul.f32 %v264, %v369
        %v393 = vmul.f32 %v265, %v369
        %v394 = vmul.f32 %v266, %v369
        %v395 = vmul.f32 %v267, %v369
        %v396 = vmul.f32 %v268, %v369
        %v397 = vmul.f32 %v269, %v369
        %v398 = vmul.f32 %v270, %v369
        %v399 = vmul.f32 %v271, %v369
        %v400 = vmul.f32 %v272, %v369
        %v401 = vmul.f32 %v273, %v369
        %v402 = vmul.f32 %v274, %v369
        %v403 = vmul.f32 %v275, %v369
        %v404 = vmul.f32 %v276, %v369
        %v405 = vmul.f32 %v277, %v369
        %v406 = vmul.f32 %v278, %v369
        %v407 = vmul.f32 %v279, %v369
        %v408 = vmul.f32 %v280, %v369
        %v409 = vmul.f32 %v281, %v369
        %v410 = vmul.f32 %v282, %v369
        %v411 = vmul.f32 %v283, %v369
        %v412 = vmul.f32 %v284, %v369
        %v413 = vmul.f32 %v285, %v369
        %v414 = vmul.f32 %v286, %v369
        %v415 = vmul.f32 %v287, %v369
        %v416 = vmul.f32 %v288, %v369
        %v417 = vmul.f32 %v289, %v369
        %vm466 = vcmask 1046528
        %v467 = vrot.slane %v370, 1
        %v468 = vrot.slane %v371, 1
        %v469 = vsel %vm466, %v467, %v468
        %v470 = vrot.slane %v372, 1
        %v471 = vsel %vm466, %v468, %v470
        %v472 = vrot.slane %v373, 1
        %v473 = vrot.slane %v374, 1
        %v474 = vsel %vm466, %v472, %v473
        %v475 = vrot.slane %v375, 1
        %v476 = vsel %vm466, %v473, %v475
        %v477 = vrot.slane %v376, 1
        %v478 = vrot.slane %v377, 1
        %v479 = vsel %vm466, %v477, %v478
        %v480 = vrot.slane %v378, 1
        %v481 = vsel %vm466, %v478, %v480
        %v482 = vrot.slane %v379, 1
        %v483 = vrot.slane %v380, 1
        %v484 = vsel %vm466, %v482, %v483
        %v485 = vrot.slane %v381, 1
        %v486 = vsel %vm466, %v483, %v485
        %v487 = vrot.slane %v382, 1
        %v488 = vrot.slane %v383, 1
        %v489 = vsel %vm466, %v487, %v488
        %v490 = vrot.slane %v384, 1
        %v491 = vsel %vm466, %v488, %v490
        %v492 = vrot.slane %v385, 1
        %v493 = vrot.slane %v386, 1
        %v494 = vsel %vm466, %v492, %v493
        %v495 = vrot.slane %v387, 1
        %v496 = vsel %vm466, %v493, %v495
        %v497 = vrot.slane %v388, 1
        %v498 = vrot.slane %v389, 1
        %v499 = vsel %vm466, %v497, %v498
        %v500 = vrot.slane %v390, 1
        %v501 = vsel %vm466, %v498, %v500
        %v502 = vrot.slane %v391, 1
        %v503 = vrot.slane %v392, 1
        %v504 = vsel %vm466, %v502, %v503
        %v505 = vrot.slane %v393, 1
        %v506 = vsel %vm466, %v503, %v505
        %v507 = vrot.slane %v394, 1
        %v508 = vrot.slane %v395, 1
        %v509 = vsel %vm466, %v507, %v508
        %v510 = vrot.slane %v396, 1
        %v511 = vsel %vm466, %v508, %v510
        %v512 = vrot.slane %v397, 1
        %v513 = vrot.slane %v398, 1
        %v514 = vsel %vm466, %v512, %v513
        %v515 = vrot.slane %v399, 1
        %v516 = vsel %vm466, %v513, %v515
        %v517 = vrot.slane %v400, 1
        %v518 = vrot.slane %v401, 1
        %v519 = vsel %vm466, %v517, %v518
        %v520 = vrot.slane %v402, 1
        %v521 = vsel %vm466, %v518, %v520
        %v522 = vrot.slane %v403, 1
        %v523 = vrot.slane %v404, 1
        %v524 = vsel %vm466, %v522, %v523
        %v525 = vrot.slane %v405, 1
        %v526 = vsel %vm466, %v523, %v525
        %v527 = vrot.slane %v406, 1
        %v528 = vrot.slane %v407, 1
        %v529 = vsel %vm466, %v527, %v528
        %v530 = vrot.slane %v408, 1
        %v531 = vsel %vm466, %v528, %v530
        %v532 = vrot.slane %v409, 1
        %v533 = vrot.slane %v410, 1
        %v534 = vsel %vm466, %v532, %v533
        %v535 = vrot.slane %v411, 1
        %v536 = vsel %vm466, %v533, %v535
        %v537 = vrot.slane %v412, 1
        %v538 = vrot.slane %v413, 1
        %v539 = vsel %vm466, %v537, %v538
        %v540 = vrot.slane %v414, 1
        %v541 = vsel %vm466, %v538, %v540
        %v542 = vrot.slane %v415, 1
        %v543 = vrot.slane %v416, 1
        %v544 = vsel %vm466, %v542, %v543
        %v545 = vrot.slane %v417, 1
        %v546 = vsel %vm466, %v543, %v545
        %v579 = vadd.f32 %v334, %v469
        %v580 = vadd.f32 %v335, %v471
        %v581 = vadd.f32 %v336, %v474
        %v582 = vadd.f32 %v337, %v476
        %v583 = vadd.f32 %v338, %v479
        %v584 = vadd.f32 %v339, %v481
        %v585 = vadd.f32 %v340, %v484
        %v586 = vadd.f32 %v341, %v486
        %v587 = vadd.f32 %v342, %v489
        %v588 = vadd.f32 %v343, %v491
        %v589 = vadd.f32 %v344, %v494
        %v590 = vadd.f32 %v345, %v496
        %v591 = vadd.f32 %v346, %v499
        %v592 = vadd.f32 %v347, %v501
        %v593 = vadd.f32 %v348, %v504
        %v594 = vadd.f32 %v349, %v506
        %v595 = vadd.f32 %v350, %v509
        %v596 = vadd.f32 %v351, %v511
        %v597 = vadd.f32 %v352, %v514
        %v598 = vadd.f32 %v353, %v516
        %v599 = vadd.f32 %v354, %v519
        %v600 = vadd.f32 %v355, %v521
        %v601 = vadd.f32 %v356, %v524
        %v602 = vadd.f32 %v357, %v526
        %v603 = vadd.f32 %v358, %v529
        %v604 = vadd.f32 %v359, %v531
        %v605 = vadd.f32 %v360, %v534
        %v606 = vadd.f32 %v361, %v536
        %v607 = vadd.f32 %v362, %v539
        %v608 = vadd.f32 %v363, %v541
        %v609 = vadd.f32 %v364, %v544
        %v610 = vadd.f32 %v365, %v546
        %v611 = vlaneseq
        %v612 = vshrl.u32 %v611, 7
        %v613 = vsub.s32 2, %v612
        %v614 = vrot.slane %v296, %v613
        %v615 = vmul.f32 %v242, %v614
        %v616 = vmul.f32 %v243, %v614
        %v617 = vmul.f32 %v244, %v614
        %v618 = vmul.f32 %v245, %v614
        %v619 = vmul.f32 %v246, %v614
        %v620 = vmul.f32 %v247, %v614
        %v621 = vmul.f32 %v248, %v614
        %v622 = vmul.f32 %v249, %v614
        %v623 = vmul.f32 %v250, %v614
        %v624 = vmul.f32 %v251, %v614
        %v625 = vmul.f32 %v252, %v614
        %v626 = vmul.f32 %v253, %v614
        %v627 = vmul.f32 %v254, %v614
        %v628 = vmul.f32 %v255, %v614
        %v629 = vmul.f32 %v256, %v614
        %v630 = vmul.f32 %v257, %v614
        %v631 = vmul.f32 %v258, %v614
        %v632 = vmul.f32 %v259, %v614
        %v633 = vmul.f32 %v260, %v614
        %v634 = vmul.f32 %v261, %v614
        %v635 = vmul.f32 %v262, %v614
        %v636 = vmul.f32 %v263, %v614
        %v637 = vmul.f32 %v264, %v614
        %v638 = vmul.f32 %v265, %v614
        %v639 = vmul.f32 %v266, %v614
        %v640 = vmul.f32 %v267, %v614
        %v641 = vmul.f32 %v268, %v614
        %v642 = vmul.f32 %v269, %v614
        %v643 = vmul.f32 %v270, %v614
        %v644 = vmul.f32 %v271, %v614
        %v645 = vmul.f32 %v272, %v614
        %v646 = vmul.f32 %v273, %v614
        %v647 = vmul.f32 %v274, %v614
        %v648 = vmul.f32 %v275, %v614
        %v649 = vmul.f32 %v276, %v614
        %v650 = vmul.f32 %v277, %v614
        %v651 = vmul.f32 %v278, %v614
        %v652 = vmul.f32 %v279, %v614
        %v653 = vmul.f32 %v280, %v614
        %v654 = vmul.f32 %v281, %v614
        %v655 = vmul.f32 %v282, %v614
        %v656 = vmul.f32 %v283, %v614
        %v657 = vmul.f32 %v284, %v614
        %v658 = vmul.f32 %v285, %v614
        %v659 = vmul.f32 %v286, %v614
        %v660 = vmul.f32 %v287, %v614
        %v661 = vmul.f32 %v288, %v614
        %v662 = vmul.f32 %v289, %v614
        %vm711 = vcmask 1045504
        %v712 = vrot.slane %v615, 2
        %v713 = vrot.slane %v616, 2
        %v714 = vsel %vm711, %v712, %v713
        %v715 = vrot.slane %v617, 2
        %v716 = vsel %vm711, %v713, %v715
        %v717 = vrot.slane %v618, 2
        %v718 = vrot.slane %v619, 2
        %v719 = vsel %vm711, %v717, %v718
        %v720 = vrot.slane %v620, 2
        %v721 = vsel %vm711, %v718, %v720
        %v722 = vrot.slane %v621, 2
        %v723 = vrot.slane %v622, 2
        %v724 = vsel %vm711, %v722, %v723
        %v725 = vrot.slane %v623, 2
        %v726 = vsel %vm711, %v723, %v725
        %v727 = vrot.slane %v624, 2
        %v728 = vrot.slane %v625, 2
        %v729 = vsel %vm711, %v727, %v728
        %v730 = vrot.slane %v626, 2
        %v731 = vsel %vm711, %v728, %v730
        %v732 = vrot.slane %v627, 2
        %v733 = vrot.slane %v628, 2
        %v734 = vsel %vm711, %v732, %v733
        %v735 = vrot.slane %v629, 2
        %v736 = vsel %vm711, %v733, %v735
        %v737 = vrot.slane %v630, 2
        %v738 = vrot.slane %v631, 2
        %v739 = vsel %vm711, %v737, %v738
        %v740 = vrot.slane %v632, 2
        %v741 = vsel %vm711, %v738, %v740
        %v742 = vrot.slane %v633, 2
        %v743 = vrot.slane %v634, 2
        %v744 = vsel %vm711, %v742, %v743
        %v745 = vrot.slane %v635, 2
        %v746 = vsel %vm711, %v743, %v745
        %v747 = vrot.slane %v636, 2
        %v748 = vrot.slane %v637, 2
        %v749 = vsel %vm711, %v747, %v748
        %v750 = vrot.slane %v638, 2
        %v751 = vsel %vm711, %v748, %v750
        %v752 = vrot.slane %v639, 2
        %v753 = vrot.slane %v640, 2
        %v754 = vsel %vm711, %v752, %v753
        %v755 = vrot.slane %v641, 2
        %v756 = vsel %vm711, %v753, %v755
        %v757 = vrot.slane %v642, 2
        %v758 = vrot.slane %v643, 2
        %v759 = vsel %vm711, %v757, %v758
        %v760 = vrot.slane %v644, 2
        %v761 = vsel %vm711, %v758, %v760
        %v762 = vrot.slane %v645, 2
        %v763 = vrot.slane %v646, 2
        %v764 = vsel %vm711, %v762, %v763
        %v765 = vrot.slane %v647, 2
        %v766 = vsel %vm711, %v763, %v765
        %v767 = vrot.slane %v648, 2
        %v768 = vrot.slane %v649, 2
        %v769 = vsel %vm711, %v767, %v768
        %v770 = vrot.slane %v650, 2
        %v771 = vsel %vm711, %v768, %v770
        %v772 = vrot.slane %v651, 2
        %v773 = vrot.slane %v652, 2
        %v774 = vsel %vm711, %v772, %v773
        %v775 = vrot.slane %v653, 2
        %v776 = vsel %vm711, %v773, %v775
        %v777 = vrot.slane %v654, 2
        %v778 = vrot.slane %v655, 2
        %v779 = vsel %vm711, %v777, %v778
        %v780 = vrot.slane %v656, 2
        %v781 = vsel %vm711, %v778, %v780
        %v782 = vrot.slane %v657, 2
        %v783 = vrot.slane %v658, 2
        %v784 = vsel %vm711, %v782, %v783
        %v785 = vrot.slane %v659, 2
        %v786 = vsel %vm711, %v783, %v785
        %v787 = vrot.slane %v660, 2
        %v788 = vrot.slane %v661, 2
        %v789 = vsel %vm711, %v787, %v788
        %v790 = vrot.slane %v662, 2
        %v791 = vsel %vm711, %v788, %v790
        %v824 = vadd.f32 %v579, %v714
        %v825 = vadd.f32 %v580, %v716
        %v826 = vadd.f32 %v581, %v719
        %v827 = vadd.f32 %v582, %v721
        %v828 = vadd.f32 %v583, %v724
        %v829 = vadd.f32 %v584, %v726
        %v830 = vadd.f32 %v585, %v729
        %v831 = vadd.f32 %v586, %v731
        %v832 = vadd.f32 %v587, %v734
        %v833 = vadd.f32 %v588, %v736
        %v834 = vadd.f32 %v589, %v739
        %v835 = vadd.f32 %v590, %v741
        %v836 = vadd.f32 %v591, %v744
        %v837 = vadd.f32 %v592, %v746
        %v838 = vadd.f32 %v593, %v749
        %v839 = vadd.f32 %v594, %v751
        %v840 = vadd.f32 %v595, %v754
        %v841 = vadd.f32 %v596, %v756
        %v842 = vadd.f32 %v597, %v759
        %v843 = vadd.f32 %v598, %v761
        %v844 = vadd.f32 %v599, %v764
        %v845 = vadd.f32 %v600, %v766
        %v846 = vadd.f32 %v601, %v769
        %v847 = vadd.f32 %v602, %v771
        %v848 = vadd.f32 %v603, %v774
        %v849 = vadd.f32 %v604, %v776
        %v850 = vadd.f32 %v605, %v779
        %v851 = vadd.f32 %v606, %v781
        %v852 = vadd.f32 %v607, %v784
        %v853 = vadd.f32 %v608, %v786
        %v854 = vadd.f32 %v609, %v789
        %v855 = vadd.f32 %v610, %v791
        %v856 = vlaneseq
        %v857 = vshrl.u32 %v856, 7
        %v858 = vsub.s32 3, %v857
        %v859 = vrot.slane %v296, %v858
        %v860 = vmul.f32 %v245, %v859
        %v861 = vmul.f32 %v246, %v859
        %v862 = vmul.f32 %v248, %v859
        %v863 = vmul.f32 %v249, %v859
        %v864 = vmul.f32 %v251, %v859
        %v865 = vmul.f32 %v252, %v859
        %v866 = vmul.f32 %v254, %v859
        %v867 = vmul.f32 %v255, %v859
        %v868 = vmul.f32 %v257, %v859
        %v869 = vmul.f32 %v258, %v859
        %v870 = vmul.f32 %v260, %v859
        %v871 = vmul.f32 %v261, %v859
        %v872 = vmul.f32 %v263, %v859
        %v873 = vmul.f32 %v264, %v859
        %v874 = vmul.f32 %v266, %v859
        %v875 = vmul.f32 %v267, %v859
        %v876 = vmul.f32 %v269, %v859
        %v877 = vmul.f32 %v270, %v859
        %v878 = vmul.f32 %v272, %v859
        %v879 = vmul.f32 %v273, %v859
        %v880 = vmul.f32 %v275, %v859
        %v881 = vmul.f32 %v276, %v859
        %v882 = vmul.f32 %v278, %v859
        %v883 = vmul.f32 %v279, %v859
        %v884 = vmul.f32 %v281, %v859
        %v885 = vmul.f32 %v282, %v859
        %v886 = vmul.f32 %v284, %v859
        %v887 = vmul.f32 %v285, %v859
        %v888 = vmul.f32 %v287, %v859
        %v889 = vmul.f32 %v288, %v859
        %v890 = vmul.f32 %v290, %v859
        %v891 = vmul.f32 %v291, %v859
        %v892 = vadd.f32 %v824, %v860
        %v893 = vadd.f32 %v825, %v861
        %v894 = vadd.f32 %v826, %v862
        %v895 = vadd.f32 %v827, %v863
        %v896 = vadd.f32 %v828, %v864
        %v897 = vadd.f32 %v829, %v865
        %v898 = vadd.f32 %v830, %v866
        %v899 = vadd.f32 %v831, %v867
        %v900 = vadd.f32 %v832, %v868
        %v901 = vadd.f32 %v833, %v869
        %v902 = vadd.f32 %v834, %v870
        %v903 = vadd.f32 %v835, %v871
        %v904 = vadd.f32 %v836, %v872
        %v905 = vadd.f32 %v837, %v873
        %v906 = vadd.f32 %v838, %v874
        %v907 = vadd.f32 %v839, %v875
        %v908 = vadd.f32 %v840, %v876
        %v909 = vadd.f32 %v841, %v877
        %v910 = vadd.f32 %v842, %v878
        %v911 = vadd.f32 %v843, %v879
        %v912 = vadd.f32 %v844, %v880
        %v913 = vadd.f32 %v845, %v881
        %v914 = vadd.f32 %v846, %v882
        %v915 = vadd.f32 %v847, %v883
        %v916 = vadd.f32 %v848, %v884
        %v917 = vadd.f32 %v849, %v885
        %v918 = vadd.f32 %v850, %v886
        %v919 = vadd.f32 %v851, %v887
        %v920 = vadd.f32 %v852, %v888
        %v921 = vadd.f32 %v853, %v889
        %v922 = vadd.f32 %v854, %v890
        %v923 = vadd.f32 %v855, %v891
        %v924 = vlaneseq
        %v925 = vshrl.u32 %v924, 7
        %v926 = vsub.s32 4, %v925
        %v927 = vrot.slane %v296, %v926
        %v928 = vmul.f32 %v245, %v927
        %v929 = vmul.f32 %v246, %v927
        %v930 = vmul.f32 %v247, %v927
        %v931 = vmul.f32 %v248, %v927
        %v932 = vmul.f32 %v249, %v927
        %v933 = vmul.f32 %v250, %v927
        %v934 = vmul.f32 %v251, %v927
        %v935 = vmul.f32 %v252, %v927
        %v936 = vmul.f32 %v253, %v927
        %v937 = vmul.f32 %v254, %v927
        %v938 = vmul.f32 %v255, %v927
        %v939 = vmul.f32 %v256, %v927
        %v940 = vmul.f32 %v257, %v927
        %v941 = vmul.f32 %v258, %v927
        %v942 = vmul.f32 %v259, %v927
        %v943 = vmul.f32 %v260, %v927
        %v944 = vmul.f32 %v261, %v927
        %v945 = vmul.f32 %v262, %v927
        %v946 = vmul.f32 %v263, %v927
        %v947 = vmul.f32 %v264, %v927
        %v948 = vmul.f32 %v265, %v927
        %v949 = vmul.f32 %v266, %v927
        %v950 = vmul.f32 %v267, %v927
        %v951 = vmul.f32 %v268, %v927
        %v952 = vmul.f32 %v269, %v927
        %v953 = vmul.f32 %v270, %v927
        %v954 = vmul.f32 %v271, %v927
        %v955 = vmul.f32 %v272, %v927
        %v956 = vmul.f32 %v273, %v927
        %v957 = vmul.f32 %v274, %v927
        %v958 = vmul.f32 %v275, %v927
        %v959 = vmul.f32 %v276, %v927
        %v960 = vmul.f32 %v277, %v927
        %v961 = vmul.f32 %v278, %v927
        %v962 = vmul.f32 %v279, %v927
        %v963 = vmul.f32 %v280, %v927
        %v964 = vmul.f32 %v281, %v927
        %v965 = vmul.f32 %v282, %v927
        %v966 = vmul.f32 %v283, %v927
        %v967 = vmul.f32 %v284, %v927
        %v968 = vmul.f32 %v285, %v927
        %v969 = vmul.f32 %v286, %v927
        %v970 = vmul.f32 %v287, %v927
        %v971 = vmul.f32 %v288, %v927
        %v972 = vmul.f32 %v289, %v927
        %v973 = vmul.f32 %v290, %v927
        %v974 = vmul.f32 %v291, %v927
        %v975 = vmul.f32 %v292, %v927
        %v1024 = vrot.slane %v928, 1
        %v1025 = vrot.slane %v929, 1
        %v1026 = vsel %vm466, %v1024, %v1025
        %v1027 = vrot.slane %v930, 1
        %v1028 = vsel %vm466, %v1025, %v1027
        %v1029 = vrot.slane %v931, 1
        %v1030 = vrot.slane %v932, 1
        %v1031 = vsel %vm466, %v1029, %v1030
        %v1032 = vrot.slane %v933, 1
        %v1033 = vsel %vm466, %v1030, %v1032
        %v1034 = vrot.slane %v934, 1
        %v1035 = vrot.slane %v935, 1
        %v1036 = vsel %vm466, %v1034, %v1035
        %v1037 = vrot.slane %v936, 1
        %v1038 = vsel %vm466, %v1035, %v1037
        %v1039 = vrot.slane %v937, 1
        %v1040 = vrot.slane %v938, 1
        %v1041 = vsel %vm466, %v1039, %v1040
        %v1042 = vrot.slane %v939, 1
        %v1043 = vsel %vm466, %v1040, %v1042
        %v1044 = vrot.slane %v940, 1
        %v1045 = vrot.slane %v941, 1
        %v1046 = vsel %vm466, %v1044, %v1045
        %v1047 = vrot.slane %v942, 1
        %v1048 = vsel %vm466, %v1045, %v1047
        %v1049 = vrot.slane %v943, 1
        %v1050 = vrot.slane %v944, 1
        %v1051 = vsel %vm466, %v1049, %v1050
        %v1052 = vrot.slane %v945, 1
        %v1053 = vsel %vm466, %v1050, %v1052
        %v1054 = vrot.slane %v946, 1
        %v1055 = vrot.slane %v947, 1
        %v1056 = vsel %vm466, %v1054, %v1055
        %v1057 = vrot.slane %v948, 1
        %v1058 = vsel %vm466, %v1055, %v1057
        %v1059 = vrot.slane %v949, 1
        %v1060 = vrot.slane %v950, 1
        %v1061 = vsel %vm466, %v1059, %v1060
        %v1062 = vrot.slane %v951, 1
        %v1063 = vsel %vm466, %v1060, %v1062
        %v1064 = vrot.slane %v952, 1
        %v1065 = vrot.slane %v953, 1
        %v1066 = vsel %vm466, %v1064, %v1065
        %v1067 = vrot.slane %v954, 1
        %v1068 = vsel %vm466, %v1065, %v1067
        %v1069 = vrot.slane %v955, 1
        %v1070 = vrot.slane %v956, 1
        %v1071 = vsel %vm466, %v1069, %v1070
        %v1072 = vrot.slane %v957, 1
        %v1073 = vsel %vm466, %v1070, %v1072
        %v1074 = vrot.slane %v958, 1
        %v1075 = vrot.slane %v959, 1
        %v1076 = vsel %vm466, %v1074, %v1075
        %v1077 = vrot.slane %v960, 1
        %v1078 = vsel %vm466, %v1075, %v1077
        %v1079 = vrot.slane %v961, 1
        %v1080 = vrot.slane %v962, 1
        %v1081 = vsel %vm466, %v1079, %v1080
        %v1082 = vrot.slane %v963, 1
        %v1083 = vsel %vm466, %v1080, %v1082
        %v1084 = vrot.slane %v964, 1
        %v1085 = vrot.slane %v965, 1
        %v1086 = vsel %vm466, %v1084, %v1085
        %v1087 = vrot.slane %v966, 1
        %v1088 = vsel %vm466, %v1085, %v1087
        %v1089 = vrot.slane %v967, 1
        %v1090 = vrot.slane %v968, 1
        %v1091 = vsel %vm466, %v1089, %v1090
        %v1092 = vrot.slane %v969, 1
        %v1093 = vsel %vm466, %v1090, %v1092
        %v1094 = vrot.slane %v970, 1
        %v1095 = vrot.slane %v971, 1
        %v1096 = vsel %vm466, %v1094, %v1095
        %v1097 = vrot.slane %v972, 1
        %v1098 = vsel %vm466, %v1095, %v1097
        %v1099 = vrot.slane %v973, 1
        %v1100 = vrot.slane %v974, 1
        %v1101 = vsel %vm466, %v1099, %v1100
        %v1102 = vrot.slane %v975, 1
        %v1103 = vsel %vm466, %v1100, %v1102
        %v1136 = vadd.f32 %v892, %v1026
        %v1137 = vadd.f32 %v893, %v1028
        %v1138 = vadd.f32 %v894, %v1031
        %v1139 = vadd.f32 %v895, %v1033
        %v1140 = vadd.f32 %v896, %v1036
        %v1141 = vadd.f32 %v897, %v1038
        %v1142 = vadd.f32 %v898, %v1041
        %v1143 = vadd.f32 %v899, %v1043
        %v1144 = vadd.f32 %v900, %v1046
        %v1145 = vadd.f32 %v901, %v1048
        %v1146 = vadd.f32 %v902, %v1051
        %v1147 = vadd.f32 %v903, %v1053
        %v1148 = vadd.f32 %v904, %v1056
        %v1149 = vadd.f32 %v905, %v1058
        %v1150 = vadd.f32 %v906, %v1061
        %v1151 = vadd.f32 %v907, %v1063
        %v1152 = vadd.f32 %v908, %v1066
        %v1153 = vadd.f32 %v909, %v1068
        %v1154 = vadd.f32 %v910, %v1071
        %v1155 = vadd.f32 %v911, %v1073
        %v1156 = vadd.f32 %v912, %v1076
        %v1157 = vadd.f32 %v913, %v1078
        %v1158 = vadd.f32 %v914, %v1081
        %v1159 = vadd.f32 %v915, %v1083
        %v1160 = vadd.f32 %v916, %v1086
        %v1161 = vadd.f32 %v917, %v1088
        %v1162 = vadd.f32 %v918, %v1091
        %v1163 = vadd.f32 %v919, %v1093
        %v1164 = vadd.f32 %v920, %v1096
        %v1165 = vadd.f32 %v921, %v1098
        %v1166 = vadd.f32 %v922, %v1101
        %v1167 = vadd.f32 %v923, %v1103
        %v1168 = vlaneseq
        %v1169 = vshrl.u32 %v1168, 7
        %v1170 = vsub.s32 5, %v1169
        %v1171 = vrot.slane %v296, %v1170
        %v1172 = vmul.f32 %v245, %v1171
        %v1173 = vmul.f32 %v246, %v1171
        %v1174 = vmul.f32 %v247, %v1171
        %v1175 = vmul.f32 %v248, %v1171
        %v1176 = vmul.f32 %v249, %v1171
        %v1177 = vmul.f32 %v250, %v1171
        %v1178 = vmul.f32 %v251, %v1171
        %v1179 = vmul.f32 %v252, %v1171
        %v1180 = vmul.f32 %v253, %v1171
        %v1181 = vmul.f32 %v254, %v1171
        %v1182 = vmul.f32 %v255, %v1171
        %v1183 = vmul.f32 %v256, %v1171
        %v1184 = vmul.f32 %v257, %v1171
        %v1185 = vmul.f32 %v258, %v1171
        %v1186 = vmul.f32 %v259, %v1171
        %v1187 = vmul.f32 %v260, %v1171
        %v1188 = vmul.f32 %v261, %v1171
        %v1189 = vmul.f32 %v262, %v1171
        %v1190 = vmul.f32 %v263, %v1171
        %v1191 = vmul.f32 %v264, %v1171
        %v1192 = vmul.f32 %v265, %v1171
        %v1193 = vmul.f32 %v266, %v1171
        %v1194 = vmul.f32 %v267, %v1171
        %v1195 = vmul.f32 %v268, %v1171
        %v1196 = vmul.f32 %v269, %v1171
        %v1197 = vmul.f32 %v270, %v1171
        %v1198 = vmul.f32 %v271, %v1171
        %v1199 = vmul.f32 %v272, %v1171
        %v1200 = vmul.f32 %v273, %v1171
        %v1201 = vmul.f32 %v274, %v1171
        %v1202 = vmul.f32 %v275, %v1171
        %v1203 = vmul.f32 %v276, %v1171
        %v1204 = vmul.f32 %v277, %v1171
        %v1205 = vmul.f32 %v278, %v1171
        %v1206 = vmul.f32 %v279, %v1171
        %v1207 = vmul.f32 %v280, %v1171
        %v1208 = vmul.f32 %v281, %v1171
        %v1209 = vmul.f32 %v282, %v1171
        %v1210 = vmul.f32 %v283, %v1171
        %v1211 = vmul.f32 %v284, %v1171
        %v1212 = vmul.f32 %v285, %v1171
        %v1213 = vmul.f32 %v286, %v1171
        %v1214 = vmul.f32 %v287, %v1171
        %v1215 = vmul.f32 %v288, %v1171
        %v1216 = vmul.f32 %v289, %v1171
        %v1217 = vmul.f32 %v290, %v1171
        %v1218 = vmul.f32 %v291, %v1171
        %v1219 = vmul.f32 %v292, %v1171
        %v1268 = vrot.slane %v1172, 2
        %v1269 = vrot.slane %v1173, 2
        %v1270 = vsel %vm711, %v1268, %v1269
        %v1271 = vrot.slane %v1174, 2
        %v1272 = vsel %vm711, %v1269, %v1271
        %v1273 = vrot.slane %v1175, 2
        %v1274 = vrot.slane %v1176, 2
        %v1275 = vsel %vm711, %v1273, %v1274
        %v1276 = vrot.slane %v1177, 2
        %v1277 = vsel %vm711, %v1274, %v1276
        %v1278 = vrot.slane %v1178, 2
        %v1279 = vrot.slane %v1179, 2
        %v1280 = vsel %vm711, %v1278, %v1279
        %v1281 = vrot.slane %v1180, 2
        %v1282 = vsel %vm711, %v1279, %v1281
        %v1283 = vrot.slane %v1181, 2
        %v1284 = vrot.slane %v1182, 2
        %v1285 = vsel %vm711, %v1283, %v1284
        %v1286 = vrot.slane %v1183, 2
        %v1287 = vsel %vm711, %v1284, %v1286
        %v1288 = vrot.slane %v1184, 2
        %v1289 = vrot.slane %v1185, 2
        %v1290 = vsel %vm711, %v1288, %v1289
        %v1291 = vrot.slane %v1186, 2
        %v1292 = vsel %vm711, %v1289, %v1291
        %v1293 = vrot.slane %v1187, 2
        %v1294 = vrot.slane %v1188, 2
        %v1295 = vsel %vm711, %v1293, %v1294
        %v1296 = vrot.slane %v1189, 2
        %v1297 = vsel %vm711, %v1294, %v1296
        %v1298 = vrot.slane %v1190, 2
        %v1299 = vrot.slane %v1191, 2
        %v1300 = vsel %vm711, %v1298, %v1299
        %v1301 = vrot.slane %v1192, 2
        %v1302 = vsel %vm711, %v1299, %v1301
        %v1303 = vrot.slane %v1193, 2
        %v1304 = vrot.slane %v1194, 2
        %v1305 = vsel %vm711, %v1303, %v1304
        %v1306 = vrot.slane %v1195, 2
        %v1307 = vsel %vm711, %v1304, %v1306
        %v1308 = vrot.slane %v1196, 2
        %v1309 = vrot.slane %v1197, 2
        %v1310 = vsel %vm711, %v1308, %v1309
        %v1311 = vrot.slane %v1198, 2
        %v1312 = vsel %vm711, %v1309, %v1311
        %v1313 = vrot.slane %v1199, 2
        %v1314 = vrot.slane %v1200, 2
        %v1315 = vsel %vm711, %v1313, %v1314
        %v1316 = vrot.slane %v1201, 2
        %v1317 = vsel %vm711, %v1314, %v1316
        %v1318 = vrot.slane %v1202, 2
        %v1319 = vrot.slane %v1203, 2
        %v1320 = vsel %vm711, %v1318, %v1319
        %v1321 = vrot.slane %v1204, 2
        %v1322 = vsel %vm711, %v1319, %v1321
        %v1323 = vrot.slane %v1205, 2
        %v1324 = vrot.slane %v1206, 2
        %v1325 = vsel %vm711, %v1323, %v1324
        %v1326 = vrot.slane %v1207, 2
        %v1327 = vsel %vm711, %v1324, %v1326
        %v1328 = vrot.slane %v1208, 2
        %v1329 = vrot.slane %v1209, 2
        %v1330 = vsel %vm711, %v1328, %v1329
        %v1331 = vrot.slane %v1210, 2
        %v1332 = vsel %vm711, %v1329, %v1331
        %v1333 = vrot.slane %v1211, 2
        %v1334 = vrot.slane %v1212, 2
        %v1335 = vsel %vm711, %v1333, %v1334
        %v1336 = vrot.slane %v1213, 2
        %v1337 = vsel %vm711, %v1334, %v1336
        %v1338 = vrot.slane %v1214, 2
        %v1339 = vrot.slane %v1215, 2
        %v1340 = vsel %vm711, %v1338, %v1339
        %v1341 = vrot.slane %v1216, 2
        %v1342 = vsel %vm711, %v1339, %v1341
        %v1343 = vrot.slane %v1217, 2
        %v1344 = vrot.slane %v1218, 2
        %v1345 = vsel %vm711, %v1343, %v1344
        %v1346 = vrot.slane %v1219, 2
        %v1347 = vsel %vm711, %v1344, %v1346
        %v1380 = vadd.f32 %v1136, %v1270
        %v1381 = vadd.f32 %v1137, %v1272
        %v1382 = vadd.f32 %v1138, %v1275
        %v1383 = vadd.f32 %v1139, %v1277
        %v1384 = vadd.f32 %v1140, %v1280
        %v1385 = vadd.f32 %v1141, %v1282
        %v1386 = vadd.f32 %v1142, %v1285
        %v1387 = vadd.f32 %v1143, %v1287
        %v1388 = vadd.f32 %v1144, %v1290
        %v1389 = vadd.f32 %v1145, %v1292
        %v1390 = vadd.f32 %v1146, %v1295
        %v1391 = vadd.f32 %v1147, %v1297
        %v1392 = vadd.f32 %v1148, %v1300
        %v1393 = vadd.f32 %v1149, %v1302
        %v1394 = vadd.f32 %v1150, %v1305
        %v1395 = vadd.f32 %v1151, %v1307
        %v1396 = vadd.f32 %v1152, %v1310
        %v1397 = vadd.f32 %v1153, %v1312
        %v1398 = vadd.f32 %v1154, %v1315
        %v1399 = vadd.f32 %v1155, %v1317
        %v1400 = vadd.f32 %v1156, %v1320
        %v1401 = vadd.f32 %v1157, %v1322
        %v1402 = vadd.f32 %v1158, %v1325
        %v1403 = vadd.f32 %v1159, %v1327
        %v1404 = vadd.f32 %v1160, %v1330
        %v1405 = vadd.f32 %v1161, %v1332
        %v1406 = vadd.f32 %v1162, %v1335
        %v1407 = vadd.f32 %v1163, %v1337
        %v1408 = vadd.f32 %v1164, %v1340
        %v1409 = vadd.f32 %v1165, %v1342
        %v1410 = vadd.f32 %v1166, %v1345
        %v1411 = vadd.f32 %v1167, %v1347
        %v1412 = vlaneseq
        %v1413 = vshrl.u32 %v1412, 7
        %v1414 = vsub.s32 6, %v1413
        %v1415 = vrot.slane %v296, %v1414
        %v1416 = vmul.f32 %v248, %v1415
        %v1417 = vmul.f32 %v249, %v1415
        %v1418 = vmul.f32 %v251, %v1415
        %v1419 = vmul.f32 %v252, %v1415
        %v1420 = vmul.f32 %v254, %v1415
        %v1421 = vmul.f32 %v255, %v1415
        %v1422 = vmul.f32 %v257, %v1415
        %v1423 = vmul.f32 %v258, %v1415
        %v1424 = vmul.f32 %v260, %v1415
        %v1425 = vmul.f32 %v261, %v1415
        %v1426 = vmul.f32 %v263, %v1415
        %v1427 = vmul.f32 %v264, %v1415
        %v1428 = vmul.f32 %v266, %v1415
        %v1429 = vmul.f32 %v267, %v1415
        %v1430 = vmul.f32 %v269, %v1415
        %v1431 = vmul.f32 %v270, %v1415
        %v1432 = vmul.f32 %v272, %v1415
        %v1433 = vmul.f32 %v273, %v1415
        %v1434 = vmul.f32 %v275, %v1415
        %v1435 = vmul.f32 %v276, %v1415
        %v1436 = vmul.f32 %v278, %v1415
        %v1437 = vmul.f32 %v279, %v1415
        %v1438 = vmul.f32 %v281, %v1415
        %v1439 = vmul.f32 %v282, %v1415
        %v1440 = vmul.f32 %v284, %v1415
        %v1441 = vmul.f32 %v285, %v1415
        %v1442 = vmul.f32 %v287, %v1415
        %v1443 = vmul.f32 %v288, %v1415
        %v1444 = vmul.f32 %v290, %v1415
        %v1445 = vmul.f32 %v291, %v1415
        %v1446 = vmul.f32 %v293, %v1415
        %v1447 = vmul.f32 %v294, %v1415
        %v1448 = vadd.f32 %v1380, %v1416
        %v1449 = vadd.f32 %v1381, %v1417
        %v1450 = vadd.f32 %v1382, %v1418
        %v1451 = vadd.f32 %v1383, %v1419
        %v1452 = vadd.f32 %v1384, %v1420
        %v1453 = vadd.f32 %v1385, %v1421
        %v1454 = vadd.f32 %v1386, %v1422
        %v1455 = vadd.f32 %v1387, %v1423
        %v1456 = vadd.f32 %v1388, %v1424
        %v1457 = vadd.f32 %v1389, %v1425
        %v1458 = vadd.f32 %v1390, %v1426
        %v1459 = vadd.f32 %v1391, %v1427
        %v1460 = vadd.f32 %v1392, %v1428
        %v1461 = vadd.f32 %v1393, %v1429
        %v1462 = vadd.f32 %v1394, %v1430
        %v1463 = vadd.f32 %v1395, %v1431
        %v1464 = vadd.f32 %v1396, %v1432
        %v1465 = vadd.f32 %v1397, %v1433
        %v1466 = vadd.f32 %v1398, %v1434
        %v1467 = vadd.f32 %v1399, %v1435
        %v1468 = vadd.f32 %v1400, %v1436
        %v1469 = vadd.f32 %v1401, %v1437
        %v1470 = vadd.f32 %v1402, %v1438
        %v1471 = vadd.f32 %v1403, %v1439
        %v1472 = vadd.f32 %v1404, %v1440
        %v1473 = vadd.f32 %v1405, %v1441
        %v1474 = vadd.f32 %v1406, %v1442
        %v1475 = vadd.f32 %v1407, %v1443
        %v1476 = vadd.f32 %v1408, %v1444
        %v1477 = vadd.f32 %v1409, %v1445
        %v1478 = vadd.f32 %v1410, %v1446
        %v1479 = vadd.f32 %v1411, %v1447
        %v1480 = vlaneseq
        %v1481 = vshrl.u32 %v1480, 7
        %v1482 = vsub.s32 7, %v1481
        %v1483 = vrot.slane %v296, %v1482
        %v1484 = vmul.f32 %v248, %v1483
        %v1485 = vmul.f32 %v249, %v1483
        %v1486 = vmul.f32 %v250, %v1483
        %v1487 = vmul.f32 %v251, %v1483
        %v1488 = vmul.f32 %v252, %v1483
        %v1489 = vmul.f32 %v253, %v1483
        %v1490 = vmul.f32 %v254, %v1483
        %v1491 = vmul.f32 %v255, %v1483
        %v1492 = vmul.f32 %v256, %v1483
        %v1493 = vmul.f32 %v257, %v1483
        %v1494 = vmul.f32 %v258, %v1483
        %v1495 = vmul.f32 %v259, %v1483
        %v1496 = vmul.f32 %v260, %v1483
        %v1497 = vmul.f32 %v261, %v1483
        %v1498 = vmul.f32 %v262, %v1483
        %v1499 = vmul.f32 %v263, %v1483
        %v1500 = vmul.f32 %v264, %v1483
        %v1501 = vmul.f32 %v265, %v1483
        %v1502 = vmul.f32 %v266, %v1483
        %v1503 = vmul.f32 %v267, %v1483
        %v1504 = vmul.f32 %v268, %v1483
        %v1505 = vmul.f32 %v269, %v1483
        %v1506 = vmul.f32 %v270, %v1483
        %v1507 = vmul.f32 %v271, %v1483
        %v1508 = vmul.f32 %v272, %v1483
        %v1509 = vmul.f32 %v273, %v1483
        %v1510 = vmul.f32 %v274, %v1483
        %v1511 = vmul.f32 %v275, %v1483
        %v1512 = vmul.f32 %v276, %v1483
        %v1513 = vmul.f32 %v277, %v1483
        %v1514 = vmul.f32 %v278, %v1483
        %v1515 = vmul.f32 %v279, %v1483
        %v1516 = vmul.f32 %v280, %v1483
        %v1517 = vmul.f32 %v281, %v1483
        %v1518 = vmul.f32 %v282, %v1483
        %v1519 = vmul.f32 %v283, %v1483
        %v1520 = vmul.f32 %v284, %v1483
        %v1521 = vmul.f32 %v285, %v1483
        %v1522 = vmul.f32 %v286, %v1483
        %v1523 = vmul.f32 %v287, %v1483
        %v1524 = vmul.f32 %v288, %v1483
        %v1525 = vmul.f32 %v289, %v1483
        %v1526 = vmul.f32 %v290, %v1483
        %v1527 = vmul.f32 %v291, %v1483
        %v1528 = vmul.f32 %v292, %v1483
        %v1529 = vmul.f32 %v293, %v1483
        %v1530 = vmul.f32 %v294, %v1483
        %v1531 = vmul.f32 %v295, %v1483
        %v1580 = vrot.slane %v1484, 1
        %v1581 = vrot.slane %v1485, 1
        %v1582 = vsel %vm466, %v1580, %v1581
        %v1583 = vrot.slane %v1486, 1
        %v1584 = vsel %vm466, %v1581, %v1583
        %v1585 = vrot.slane %v1487, 1
        %v1586 = vrot.slane %v1488, 1
        %v1587 = vsel %vm466, %v1585, %v1586
        %v1588 = vrot.slane %v1489, 1
        %v1589 = vsel %vm466, %v1586, %v1588
        %v1590 = vrot.slane %v1490, 1
        %v1591 = vrot.slane %v1491, 1
        %v1592 = vsel %vm466, %v1590, %v1591
        %v1593 = vrot.slane %v1492, 1
        %v1594 = vsel %vm466, %v1591, %v1593
        %v1595 = vrot.slane %v1493, 1
        %v1596 = vrot.slane %v1494, 1
        %v1597 = vsel %vm466, %v1595, %v1596
        %v1598 = vrot.slane %v1495, 1
        %v1599 = vsel %vm466, %v1596, %v1598
        %v1600 = vrot.slane %v1496, 1
        %v1601 = vrot.slane %v1497, 1
        %v1602 = vsel %vm466, %v1600, %v1601
        %v1603 = vrot.slane %v1498, 1
        %v1604 = vsel %vm466, %v1601, %v1603
        %v1605 = vrot.slane %v1499, 1
        %v1606 = vrot.slane %v1500, 1
        %v1607 = vsel %vm466, %v1605, %v1606
        %v1608 = vrot.slane %v1501, 1
        %v1609 = vsel %vm466, %v1606, %v1608
        %v1610 = vrot.slane %v1502, 1
        %v1611 = vrot.slane %v1503, 1
        %v1612 = vsel %vm466, %v1610, %v1611
        %v1613 = vrot.slane %v1504, 1
        %v1614 = vsel %vm466, %v1611, %v1613
        %v1615 = vrot.slane %v1505, 1
        %v1616 = vrot.slane %v1506, 1
        %v1617 = vsel %vm466, %v1615, %v1616
        %v1618 = vrot.slane %v1507, 1
        %v1619 = vsel %vm466, %v1616, %v1618
        %v1620 = vrot.slane %v1508, 1
        %v1621 = vrot.slane %v1509, 1
        %v1622 = vsel %vm466, %v1620, %v1621
        %v1623 = vrot.slane %v1510, 1
        %v1624 = vsel %vm466, %v1621, %v1623
        %v1625 = vrot.slane %v1511, 1
        %v1626 = vrot.slane %v1512, 1
        %v1627 = vsel %vm466, %v1625, %v1626
        %v1628 = vrot.slane %v1513, 1
        %v1629 = vsel %vm466, %v1626, %v1628
        %v1630 = vrot.slane %v1514, 1
        %v1631 = vrot.slane %v1515, 1
        %v1632 = vsel %vm466, %v1630, %v1631
        %v1633 = vrot.slane %v1516, 1
        %v1634 = vsel %vm466, %v1631, %v1633
        %v1635 = vrot.slane %v1517, 1
        %v1636 = vrot.slane %v1518, 1
        %v1637 = vsel %vm466, %v1635, %v1636
        %v1638 = vrot.slane %v1519, 1
        %v1639 = vsel %vm466, %v1636, %v1638
        %v1640 = vrot.slane %v1520, 1
        %v1641 = vrot.slane %v1521, 1
        %v1642 = vsel %vm466, %v1640, %v1641
        %v1643 = vrot.slane %v1522, 1
        %v1644 = vsel %vm466, %v1641, %v1643
        %v1645 = vrot.slane %v1523, 1
        %v1646 = vrot.slane %v1524, 1
        %v1647 = vsel %vm466, %v1645, %v1646
        %v1648 = vrot.slane %v1525, 1
        %v1649 = vsel %vm466, %v1646, %v1648
        %v1650 = vrot.slane %v1526, 1
        %v1651 = vrot.slane %v1527, 1
        %v1652 = vsel %vm466, %v1650, %v1651
        %v1653 = vrot.slane %v1528, 1
        %v1654 = vsel %vm466, %v1651, %v1653
        %v1655 = vrot.slane %v1529, 1
        %v1656 = vrot.slane %v1530, 1
        %v1657 = vsel %vm466, %v1655, %v1656
        %v1658 = vrot.slane %v1531, 1
        %v1659 = vsel %vm466, %v1656, %v1658
        %v1692 = vadd.f32 %v1448, %v1582
        %v1693 = vadd.f32 %v1449, %v1584
        %v1694 = vadd.f32 %v1450, %v1587
        %v1695 = vadd.f32 %v1451, %v1589
        %v1696 = vadd.f32 %v1452, %v1592
        %v1697 = vadd.f32 %v1453, %v1594
        %v1698 = vadd.f32 %v1454, %v1597
        %v1699 = vadd.f32 %v1455, %v1599
        %v1700 = vadd.f32 %v1456, %v1602
        %v1701 = vadd.f32 %v1457, %v1604
        %v1702 = vadd.f32 %v1458, %v1607
        %v1703 = vadd.f32 %v1459, %v1609
        %v1704 = vadd.f32 %v1460, %v1612
        %v1705 = vadd.f32 %v1461, %v1614
        %v1706 = vadd.f32 %v1462, %v1617
        %v1707 = vadd.f32 %v1463, %v1619
        %v1708 = vadd.f32 %v1464, %v1622
        %v1709 = vadd.f32 %v1465, %v1624
        %v1710 = vadd.f32 %v1466, %v1627
        %v1711 = vadd.f32 %v1467, %v1629
        %v1712 = vadd.f32 %v1468, %v1632
        %v1713 = vadd.f32 %v1469, %v1634
        %v1714 = vadd.f32 %v1470, %v1637
        %v1715 = vadd.f32 %v1471, %v1639
        %v1716 = vadd.f32 %v1472, %v1642
        %v1717 = vadd.f32 %v1473, %v1644
        %v1718 = vadd.f32 %v1474, %v1647
        %v1719 = vadd.f32 %v1475, %v1649
        %v1720 = vadd.f32 %v1476, %v1652
        %v1721 = vadd.f32 %v1477, %v1654
        %v1722 = vadd.f32 %v1478, %v1657
        %v1723 = vadd.f32 %v1479, %v1659
        %v1724 = vlaneseq
        %v1725 = vshrl.u32 %v1724, 7
        %v1726 = vsub.s32 0, %v1725
        %v1727 = vrot.slane %v297, %v1726
        %v1728 = vmul.f32 %v248, %v1727
        %v1729 = vmul.f32 %v249, %v1727
        %v1730 = vmul.f32 %v250, %v1727
        %v1731 = vmul.f32 %v251, %v1727
        %v1732 = vmul.f32 %v252, %v1727
        %v1733 = vmul.f32 %v253, %v1727
        %v1734 = vmul.f32 %v254, %v1727
        %v1735 = vmul.f32 %v255, %v1727
        %v1736 = vmul.f32 %v256, %v1727
        %v1737 = vmul.f32 %v257, %v1727
        %v1738 = vmul.f32 %v258, %v1727
        %v1739 = vmul.f32 %v259, %v1727
        %v1740 = vmul.f32 %v260, %v1727
        %v1741 = vmul.f32 %v261, %v1727
        %v1742 = vmul.f32 %v262, %v1727
        %v1743 = vmul.f32 %v263, %v1727
        %v1744 = vmul.f32 %v264, %v1727
        %v1745 = vmul.f32 %v265, %v1727
        %v1746 = vmul.f32 %v266, %v1727
        %v1747 = vmul.f32 %v267, %v1727
        %v1748 = vmul.f32 %v268, %v1727
        %v1749 = vmul.f32 %v269, %v1727
        %v1750 = vmul.f32 %v270, %v1727
        %v1751 = vmul.f32 %v271, %v1727
        %v1752 = vmul.f32 %v272, %v1727
        %v1753 = vmul.f32 %v273, %v1727
        %v1754 = vmul.f32 %v274, %v1727
        %v1755 = vmul.f32 %v275, %v1727
        %v1756 = vmul.f32 %v276, %v1727
        %v1757 = vmul.f32 %v277, %v1727
        %v1758 = vmul.f32 %v278, %v1727
        %v1759 = vmul.f32 %v279, %v1727
        %v1760 = vmul.f32 %v280, %v1727
        %v1761 = vmul.f32 %v281, %v1727
        %v1762 = vmul.f32 %v282, %v1727
        %v1763 = vmul.f32 %v283, %v1727
        %v1764 = vmul.f32 %v284, %v1727
        %v1765 = vmul.f32 %v285, %v1727
        %v1766 = vmul.f32 %v286, %v1727
        %v1767 = vmul.f32 %v287, %v1727
        %v1768 = vmul.f32 %v288, %v1727
        %v1769 = vmul.f32 %v289, %v1727
        %v1770 = vmul.f32 %v290, %v1727
        %v1771 = vmul.f32 %v291, %v1727
        %v1772 = vmul.f32 %v292, %v1727
        %v1773 = vmul.f32 %v293, %v1727
        %v1774 = vmul.f32 %v294, %v1727
        %v1775 = vmul.f32 %v295, %v1727
        %v1824 = vrot.slane %v1728, 2
        %v1825 = vrot.slane %v1729, 2
        %v1826 = vsel %vm711, %v1824, %v1825
        %v1827 = vrot.slane %v1730, 2
        %v1828 = vsel %vm711, %v1825, %v1827
        %v1829 = vrot.slane %v1731, 2
        %v1830 = vrot.slane %v1732, 2
        %v1831 = vsel %vm711, %v1829, %v1830
        %v1832 = vrot.slane %v1733, 2
        %v1833 = vsel %vm711, %v1830, %v1832
        %v1834 = vrot.slane %v1734, 2
        %v1835 = vrot.slane %v1735, 2
        %v1836 = vsel %vm711, %v1834, %v1835
        %v1837 = vrot.slane %v1736, 2
        %v1838 = vsel %vm711, %v1835, %v1837
        %v1839 = vrot.slane %v1737, 2
        %v1840 = vrot.slane %v1738, 2
        %v1841 = vsel %vm711, %v1839, %v1840
        %v1842 = vrot.slane %v1739, 2
        %v1843 = vsel %vm711, %v1840, %v1842
        %v1844 = vrot.slane %v1740, 2
        %v1845 = vrot.slane %v1741, 2
        %v1846 = vsel %vm711, %v1844, %v1845
        %v1847 = vrot.slane %v1742, 2
        %v1848 = vsel %vm711, %v1845, %v1847
        %v1849 = vrot.slane %v1743, 2
        %v1850 = vrot.slane %v1744, 2
        %v1851 = vsel %vm711, %v1849, %v1850
        %v1852 = vrot.slane %v1745, 2
        %v1853 = vsel %vm711, %v1850, %v1852
        %v1854 = vrot.slane %v1746, 2
        %v1855 = vrot.slane %v1747, 2
        %v1856 = vsel %vm711, %v1854, %v1855
        %v1857 = vrot.slane %v1748, 2
        %v1858 = vsel %vm711, %v1855, %v1857
        %v1859 = vrot.slane %v1749, 2
        %v1860 = vrot.slane %v1750, 2
        %v1861 = vsel %vm711, %v1859, %v1860
        %v1862 = vrot.slane %v1751, 2
        %v1863 = vsel %vm711, %v1860, %v1862
        %v1864 = vrot.slane %v1752, 2
        %v1865 = vrot.slane %v1753, 2
        %v1866 = vsel %vm711, %v1864, %v1865
        %v1867 = vrot.slane %v1754, 2
        %v1868 = vsel %vm711, %v1865, %v1867
        %v1869 = vrot.slane %v1755, 2
        %v1870 = vrot.slane %v1756, 2
        %v1871 = vsel %vm711, %v1869, %v1870
        %v1872 = vrot.slane %v1757, 2
        %v1873 = vsel %vm711, %v1870, %v1872
        %v1874 = vrot.slane %v1758, 2
        %v1875 = vrot.slane %v1759, 2
        %v1876 = vsel %vm711, %v1874, %v1875
        %v1877 = vrot.slane %v1760, 2
        %v1878 = vsel %vm711, %v1875, %v1877
        %v1879 = vrot.slane %v1761, 2
        %v1880 = vrot.slane %v1762, 2
        %v1881 = vsel %vm711, %v1879, %v1880
        %v1882 = vrot.slane %v1763, 2
        %v1883 = vsel %vm711, %v1880, %v1882
        %v1884 = vrot.slane %v1764, 2
        %v1885 = vrot.slane %v1765, 2
        %v1886 = vsel %vm711, %v1884, %v1885
        %v1887 = vrot.slane %v1766, 2
        %v1888 = vsel %vm711, %v1885, %v1887
        %v1889 = vrot.slane %v1767, 2
        %v1890 = vrot.slane %v1768, 2
        %v1891 = vsel %vm711, %v1889, %v1890
        %v1892 = vrot.slane %v1769, 2
        %v1893 = vsel %vm711, %v1890, %v1892
        %v1894 = vrot.slane %v1770, 2
        %v1895 = vrot.slane %v1771, 2
        %v1896 = vsel %vm711, %v1894, %v1895
        %v1897 = vrot.slane %v1772, 2
        %v1898 = vsel %vm711, %v1895, %v1897
        %v1899 = vrot.slane %v1773, 2
        %v1900 = vrot.slane %v1774, 2
        %v1901 = vsel %vm711, %v1899, %v1900
        %v1902 = vrot.slane %v1775, 2
        %v1903 = vsel %vm711, %v1900, %v1902
        %v1936 = vadd.f32 %v1692, %v1826
        %v1937 = vadd.f32 %v1693, %v1828
        %v1938 = vadd.f32 %v1694, %v1831
        %v1939 = vadd.f32 %v1695, %v1833
        %v1940 = vadd.f32 %v1696, %v1836
        %v1941 = vadd.f32 %v1697, %v1838
        %v1942 = vadd.f32 %v1698, %v1841
        %v1943 = vadd.f32 %v1699, %v1843
        %v1944 = vadd.f32 %v1700, %v1846
        %v1945 = vadd.f32 %v1701, %v1848
        %v1946 = vadd.f32 %v1702, %v1851
        %v1947 = vadd.f32 %v1703, %v1853
        %v1948 = vadd.f32 %v1704, %v1856
        %v1949 = vadd.f32 %v1705, %v1858
        %v1950 = vadd.f32 %v1706, %v1861
        %v1951 = vadd.f32 %v1707, %v1863
        %v1952 = vadd.f32 %v1708, %v1866
        %v1953 = vadd.f32 %v1709, %v1868
        %v1954 = vadd.f32 %v1710, %v1871
        %v1955 = vadd.f32 %v1711, %v1873
        %v1956 = vadd.f32 %v1712, %v1876
        %v1957 = vadd.f32 %v1713, %v1878
        %v1958 = vadd.f32 %v1714, %v1881
        %v1959 = vadd.f32 %v1715, %v1883
        %v1960 = vadd.f32 %v1716, %v1886
        %v1961 = vadd.f32 %v1717, %v1888
        %v1962 = vadd.f32 %v1718, %v1891
        %v1963 = vadd.f32 %v1719, %v1893
        %v1964 = vadd.f32 %v1720, %v1896
        %v1965 = vadd.f32 %v1721, %v1898
        %v1966 = vadd.f32 %v1722, %v1901
        %v1967 = vadd.f32 %v1723, %v1903
        %v1968 = vld [vmem:[%s2] sm:$0x1]
        %v1970 = vlaneseq
        %v1971 = vshrl.u32 %v1970, 7
        %v1972 = vsub.s32 0, %v1971
        %v1973 = vrot.slane %v1968, %v1972
        %v1975 = vadd.f32 %v1936, %v1973
        %v1976 = vadd.f32 %v1937, %v1973
        %v1977 = vadd.f32 %v1938, %v1973
        %v1978 = vadd.f32 %v1939, %v1973
        %v1979 = vadd.f32 %v1940, %v1973
        %v1980 = vadd.f32 %v1941, %v1973
        %v1981 = vadd.f32 %v1942, %v1973
        %v1982 = vadd.f32 %v1943, %v1973
        %v1983 = vadd.f32 %v1944, %v1973
        %v1984 = vadd.f32 %v1945, %v1973
        %v1985 = vadd.f32 %v1946, %v1973
        %v1986 = vadd.f32 %v1947, %v1973
        %v1987 = vadd.f32 %v1948, %v1973
        %v1988 = vadd.f32 %v1949, %v1973
        %v1989 = vadd.f32 %v1950, %v1973
        %v1990 = vadd.f32 %v1951, %v1973
        %v1991 = vadd.f32 %v1952, %v1973
        %v1992 = vadd.f32 %v1953, %v1973
        %v1993 = vadd.f32 %v1954, %v1973
        %v1994 = vadd.f32 %v1955, %v1973
        %v1995 = vadd.f32 %v1956, %v1973
        %v1996 = vadd.f32 %v1957, %v1973
        %v1997 = vadd.f32 %v1958, %v1973
        %v1998 = vadd.f32 %v1959, %v1973
        %v1999 = vadd.f32 %v1960, %v1973
        %v2000 = vadd.f32 %v1961, %v1973
        %v2001 = vadd.f32 %v1962, %v1973
        %v2002 = vadd.f32 %v1963, %v1973
        %v2003 = vadd.f32 %v1964, %v1973
        %v2004 = vadd.f32 %v1965, %v1973
        %v2005 = vadd.f32 %v1966, %v1973
        %v2006 = vadd.f32 %v1967, %v1973
        %v2007 = vxor.u32 %v1975, 2147483648
        %v2008 = vxor.u32 %v1976, 2147483648
        %v2009 = vxor.u32 %v1977, 2147483648
        %v2010 = vxor.u32 %v1978, 2147483648
        %v2011 = vxor.u32 %v1979, 2147483648
        %v2012 = vxor.u32 %v1980, 2147483648
        %v2013 = vxor.u32 %v1981, 2147483648
        %v2014 = vxor.u32 %v1982, 2147483648
        %v2015 = vxor.u32 %v1983, 2147483648
        %v2016 = vxor.u32 %v1984, 2147483648
        %v2017 = vxor.u32 %v1985, 2147483648
        %v2018 = vxor.u32 %v1986, 2147483648
        %v2019 = vxor.u32 %v1987, 2147483648
        %v2020 = vxor.u32 %v1988, 2147483648
        %v2021 = vxor.u32 %v1989, 2147483648
        %v2022 = vxor.u32 %v1990, 2147483648
        %v2023 = vxor.u32 %v1991, 2147483648
        %v2024 = vxor.u32 %v1992, 2147483648
        %v2025 = vxor.u32 %v1993, 2147483648
        %v2026 = vxor.u32 %v1994, 2147483648
        %v2027 = vxor.u32 %v1995, 2147483648
        %v2028 = vxor.u32 %v1996, 2147483648
        %v2029 = vxor.u32 %v1997, 2147483648
        %v2030 = vxor.u32 %v1998, 2147483648
        %v2031 = vxor.u32 %v1999, 2147483648
        %v2032 = vxor.u32 %v2000, 2147483648
        %v2033 = vxor.u32 %v2001, 2147483648
        %v2034 = vxor.u32 %v2002, 2147483648
        %v2035 = vxor.u32 %v2003, 2147483648
        %v2036 = vxor.u32 %v2004, 2147483648
        %v2037 = vxor.u32 %v2005, 2147483648
        %v2038 = vxor.u32 %v2006, 2147483648
        %v2039 = vmul.f32 %v2007, 1.442695
        %v2040 = vpow.pop %v2039
        %v2041 = vmul.f32 %v2008, 1.442695
        %v2042 = vpow.pop %v2041
        %v2043 = vmul.f32 %v2009, 1.442695
        %v2044 = vpow.pop %v2043
        %v2045 = vmul.f32 %v2010, 1.442695
        %v2046 = vpow.pop %v2045
        %v2047 = vmul.f32 %v2011, 1.442695
        %v2048 = vpow.pop %v2047
        %v2049 = vmul.f32 %v2012, 1.442695
        %v2050 = vpow.pop %v2049
        %v2051 = vmul.f32 %v2013, 1.442695
        %v2052 = vpow.pop %v2051
        %v2053 = vmul.f32 %v2014, 1.442695
        %v2054 = vpow.pop %v2053
        %v2055 = vmul.f32 %v2015, 1.442695
        %v2056 = vpow.pop %v2055
        %v2057 = vmul.f32 %v2016, 1.442695
        %v2058 = vpow.pop %v2057
        %v2059 = vmul.f32 %v2017, 1.442695
        %v2060 = vpow.pop %v2059
        %v2061 = vmul.f32 %v2018, 1.442695
        %v2062 = vpow.pop %v2061
        %v2063 = vmul.f32 %v2019, 1.442695
        %v2064 = vpow.pop %v2063
        %v2065 = vmul.f32 %v2020, 1.442695
        %v2066 = vpow.pop %v2065
        %v2067 = vmul.f32 %v2021, 1.442695
        %v2068 = vpow.pop %v2067
        %v2069 = vmul.f32 %v2022, 1.442695
        %v2070 = vpow.pop %v2069
        %v2071 = vmul.f32 %v2023, 1.442695
        %v2072 = vpow.pop %v2071
        %v2073 = vmul.f32 %v2024, 1.442695
        %v2074 = vpow.pop %v2073
        %v2075 = vmul.f32 %v2025, 1.442695
        %v2076 = vpow.pop %v2075
        %v2077 = vmul.f32 %v2026, 1.442695
        %v2078 = vpow.pop %v2077
        %v2079 = vmul.f32 %v2027, 1.442695
        %v2080 = vpow.pop %v2079
        %v2081 = vmul.f32 %v2028, 1.442695
        %v2082 = vpow.pop %v2081
        %v2083 = vmul.f32 %v2029, 1.442695
        %v2084 = vpow.pop %v2083
        %v2085 = vmul.f32 %v2030, 1.442695
        %v2086 = vpow.pop %v2085
        %v2087 = vmul.f32 %v2031, 1.442695
        %v2088 = vpow.pop %v2087
        %v2089 = vmul.f32 %v2032, 1.442695
        %v2090 = vpow.pop %v2089
        %v2091 = vmul.f32 %v2033, 1.442695
        %v2092 = vpow.pop %v2091
        %v2093 = vmul.f32 %v2034, 1.442695
        %v2094 = vpow.pop %v2093
        %v2095 = vmul.f32 %v2035, 1.442695
        %v2096 = vpow.pop %v2095
        %v2097 = vmul.f32 %v2036, 1.442695
        %v2098 = vpow.pop %v2097
        %v2099 = vmul.f32 %v2037, 1.442695
        %v2100 = vpow.pop %v2099
        %v2101 = vmul.f32 %v2038, 1.442695
        %v2102 = vpow.pop %v2101
        %v2103 = vadd.f32 %v2040, 1.0
        %v2104 = vadd.f32 %v2042, 1.0
        %v2105 = vadd.f32 %v2044, 1.0
        %v2106 = vadd.f32 %v2046, 1.0
        %v2107 = vadd.f32 %v2048, 1.0
        %v2108 = vadd.f32 %v2050, 1.0
        %v2109 = vadd.f32 %v2052, 1.0
        %v2110 = vadd.f32 %v2054, 1.0
        %v2111 = vadd.f32 %v2056, 1.0
        %v2112 = vadd.f32 %v2058, 1.0
        %v2113 = vadd.f32 %v2060, 1.0
        %v2114 = vadd.f32 %v2062, 1.0
        %v2115 = vadd.f32 %v2064, 1.0
        %v2116 = vadd.f32 %v2066, 1.0
        %v2117 = vadd.f32 %v2068, 1.0
        %v2118 = vadd.f32 %v2070, 1.0
        %v2119 = vadd.f32 %v2072, 1.0
        %v2120 = vadd.f32 %v2074, 1.0
        %v2121 = vadd.f32 %v2076, 1.0
        %v2122 = vadd.f32 %v2078, 1.0
        %v2123 = vadd.f32 %v2080, 1.0
        %v2124 = vadd.f32 %v2082, 1.0
        %v2125 = vadd.f32 %v2084, 1.0
        %v2126 = vadd.f32 %v2086, 1.0
        %v2127 = vadd.f32 %v2088, 1.0
        %v2128 = vadd.f32 %v2090, 1.0
        %v2129 = vadd.f32 %v2092, 1.0
        %v2130 = vadd.f32 %v2094, 1.0
        %v2131 = vadd.f32 %v2096, 1.0
        %v2132 = vadd.f32 %v2098, 1.0
        %v2133 = vadd.f32 %v2100, 1.0
        %v2134 = vadd.f32 %v2102, 1.0
        %v2135 = vrcp.pop %v2103
        %v2136 = vmul.f32 1.0, %v2135
        %v2137 = vrcp.pop %v2104
        %v2138 = vmul.f32 1.0, %v2137
        %v2139 = vrcp.pop %v2105
        %v2140 = vmul.f32 1.0, %v2139
        %v2141 = vrcp.pop %v2106
        %v2142 = vmul.f32 1.0, %v2141
        %v2143 = vrcp.pop %v2107
        %v2144 = vmul.f32 1.0, %v2143
        %v2145 = vrcp.pop %v2108
        %v2146 = vmul.f32 1.0, %v2145
        %v2147 = vrcp.pop %v2109
        %v2148 = vmul.f32 1.0, %v2147
        %v2149 = vrcp.pop %v2110
        %v2150 = vmul.f32 1.0, %v2149
        %v2151 = vrcp.pop %v2111
        %v2152 = vmul.f32 1.0, %v2151
        %v2153 = vrcp.pop %v2112
        %v2154 = vmul.f32 1.0, %v2153
        %v2155 = vrcp.pop %v2113
        %v2156 = vmul.f32 1.0, %v2155
        %v2157 = vrcp.pop %v2114
        %v2158 = vmul.f32 1.0, %v2157
        %v2159 = vrcp.pop %v2115
        %v2160 = vmul.f32 1.0, %v2159
        %v2161 = vrcp.pop %v2116
        %v2162 = vmul.f32 1.0, %v2161
        %v2163 = vrcp.pop %v2117
        %v2164 = vmul.f32 1.0, %v2163
        %v2165 = vrcp.pop %v2118
        %v2166 = vmul.f32 1.0, %v2165
        %v2167 = vrcp.pop %v2119
        %v2168 = vmul.f32 1.0, %v2167
        %v2169 = vrcp.pop %v2120
        %v2170 = vmul.f32 1.0, %v2169
        %v2171 = vrcp.pop %v2121
        %v2172 = vmul.f32 1.0, %v2171
        %v2173 = vrcp.pop %v2122
        %v2174 = vmul.f32 1.0, %v2173
        %v2175 = vrcp.pop %v2123
        %v2176 = vmul.f32 1.0, %v2175
        %v2177 = vrcp.pop %v2124
        %v2178 = vmul.f32 1.0, %v2177
        %v2179 = vrcp.pop %v2125
        %v2180 = vmul.f32 1.0, %v2179
        %v2181 = vrcp.pop %v2126
        %v2182 = vmul.f32 1.0, %v2181
        %v2183 = vrcp.pop %v2127
        %v2184 = vmul.f32 1.0, %v2183
        %v2185 = vrcp.pop %v2128
        %v2186 = vmul.f32 1.0, %v2185
        %v2187 = vrcp.pop %v2129
        %v2188 = vmul.f32 1.0, %v2187
        %v2189 = vrcp.pop %v2130
        %v2190 = vmul.f32 1.0, %v2189
        %v2191 = vrcp.pop %v2131
        %v2192 = vmul.f32 1.0, %v2191
        %v2193 = vrcp.pop %v2132
        %v2194 = vmul.f32 1.0, %v2193
        %v2195 = vrcp.pop %v2133
        %v2196 = vmul.f32 1.0, %v2195
        %v2197 = vrcp.pop %v2134
        %v2198 = vmul.f32 1.0, %v2197
        %v2199 = vmul.f32 %v1975, %v2136
        %v2200 = vmul.f32 %v1976, %v2138
        %v2201 = vmul.f32 %v1977, %v2140
        %v2202 = vmul.f32 %v1978, %v2142
        %v2203 = vmul.f32 %v1979, %v2144
        %v2204 = vmul.f32 %v1980, %v2146
        %v2205 = vmul.f32 %v1981, %v2148
        %v2206 = vmul.f32 %v1982, %v2150
        %v2207 = vmul.f32 %v1983, %v2152
        %v2208 = vmul.f32 %v1984, %v2154
        %v2209 = vmul.f32 %v1985, %v2156
        %v2210 = vmul.f32 %v1986, %v2158
        %v2211 = vmul.f32 %v1987, %v2160
        %v2212 = vmul.f32 %v1988, %v2162
        %v2213 = vmul.f32 %v1989, %v2164
        %v2214 = vmul.f32 %v1990, %v2166
        %v2215 = vmul.f32 %v1991, %v2168
        %v2216 = vmul.f32 %v1992, %v2170
        %v2217 = vmul.f32 %v1993, %v2172
        %v2218 = vmul.f32 %v1994, %v2174
        %v2219 = vmul.f32 %v1995, %v2176
        %v2220 = vmul.f32 %v1996, %v2178
        %v2221 = vmul.f32 %v1997, %v2180
        %v2222 = vmul.f32 %v1998, %v2182
        %v2223 = vmul.f32 %v1999, %v2184
        %v2224 = vmul.f32 %v2000, %v2186
        %v2225 = vmul.f32 %v2001, %v2188
        %v2226 = vmul.f32 %v2002, %v2190
        %v2227 = vmul.f32 %v2003, %v2192
        %v2228 = vmul.f32 %v2004, %v2194
        %v2229 = vmul.f32 %v2005, %v2196
        %v2230 = vmul.f32 %v2006, %v2198
        %v2231 = vpack.c.bf16 %v2200, %v2199
        %v2232 = vpack.c.bf16 %v2202, %v2201
        %v2233 = vpack.c.bf16 %v2204, %v2203
        %v2234 = vpack.c.bf16 %v2206, %v2205
        %v2235 = vpack.c.bf16 %v2208, %v2207
        %v2236 = vpack.c.bf16 %v2210, %v2209
        %v2237 = vpack.c.bf16 %v2212, %v2211
        %v2238 = vpack.c.bf16 %v2214, %v2213
        %v2239 = vpack.c.bf16 %v2216, %v2215
        %v2240 = vpack.c.bf16 %v2218, %v2217
        %v2241 = vpack.c.bf16 %v2220, %v2219
        %v2242 = vpack.c.bf16 %v2222, %v2221
        %v2243 = vpack.c.bf16 %v2224, %v2223
        %v2244 = vpack.c.bf16 %v2226, %v2225
        %v2245 = vpack.c.bf16 %v2228, %v2227
        %v2246 = vpack.c.bf16 %v2230, %v2229
        %v2247 = vld [vmem:[%s3] sm:$0xf]
        %v2248 = vld [vmem:[%s3 + $0x4] sm:$0xf]
        %v2249 = vld [vmem:[%s3 + $0x8] sm:$0xf]
        %v2250 = vld [vmem:[%s3 + $0xc] sm:$0xf]
        %v2251 = vld [vmem:[%s4] sm:$0x1]
        %v2253 = vlaneseq
        %v2254 = vshrl.u32 %v2253, 7
        %v2255 = vsub.s32 0, %v2254
        %v2256 = vrot.slane %v2251, %v2255
        %v2262 = vunpack.c.l.b16 %v2247
        %v2263 = vunpack.c.l.b16 %v2248
        %v2264 = vunpack.c.l.b16 %v2249
        %v2265 = vunpack.c.l.b16 %v2250
        %v2266 = vpack.c.b16 %v2263, %v2262
        %v2267 = vpack.c.b16 %v2265, %v2264
        %vm2270 = vcmask 261120
        %v2272 = vsel %vm2270, %v2231, 0
        %v2275 = vsel %vm2270, %v2232, 0
        %v2278 = vsel %vm2270, %v2233, 0
        %v2281 = vsel %vm2270, %v2234, 0
        %v2284 = vsel %vm2270, %v2235, 0
        %v2287 = vsel %vm2270, %v2236, 0
        %v2290 = vsel %vm2270, %v2237, 0
        %v2293 = vsel %vm2270, %v2238, 0
        %v2296 = vsel %vm2270, %v2239, 0
        %v2299 = vsel %vm2270, %v2240, 0
        %v2302 = vsel %vm2270, %v2241, 0
        %v2305 = vsel %vm2270, %v2242, 0
        %v2308 = vsel %vm2270, %v2243, 0
        %v2311 = vsel %vm2270, %v2244, 0
        %v2314 = vsel %vm2270, %v2245, 0
        %v2317 = vsel %vm2270, %v2246, 0
        %2319 = vmatprep.subr.bf16.mxu0 0
        %2320 = vmatpush1.bf16.msra.mxu0 %v2266
        %2321 = vmatprep.subr.bf16.mxu0 0
        %2322 = vmatpush1.bf16.msra.mxu0 %v2267
        %2323 = vmatprep.subr.bf16.mxu0 0
        %2324 = vmatpush1.bf16.msra.mxu0 0
        %2325 = vmatprep.subr.bf16.mxu0 0
        %2326 = vmatpush1.bf16.msra.mxu0 0
        %2327 = vmatprep.subr.bf16.mxu0 0
        %2328 = vmatpush1.bf16.msra.mxu0 0
        %2329 = vmatprep.subr.bf16.mxu0 0
        %2330 = vmatpush1.bf16.msra.mxu0 0
        %2331 = vmatprep.subr.bf16.mxu0 0
        %2332 = vmatpush1.bf16.msra.mxu0 0
        %2333 = vmatprep.subr.bf16.mxu0 0
        %2334 = vmatpush1.bf16.msra.mxu0 0
        %2335 = vmatprep.subr.bf16.mxu0 0
        %2336 = vmatpush1.bf16.msra.mxu0 0
        %2337 = vmatprep.subr.bf16.mxu0 0
        %2338 = vmatpush1.bf16.msra.mxu0 0
        %2339 = vmatprep.subr.bf16.mxu0 0
        %2340 = vmatpush1.bf16.msra.mxu0 0
        %2341 = vmatprep.subr.bf16.mxu0 0
        %2342 = vmatpush1.bf16.msra.mxu0 0
        %2343 = vmatprep.subr.bf16.mxu0 0
        %2344 = vmatpush1.bf16.msra.mxu0 0
        %2345 = vmatprep.subr.bf16.mxu0 0
        %2346 = vmatpush1.bf16.msra.mxu0 0
        %2347 = vmatprep.subr.bf16.mxu0 0
        %2348 = vmatpush1.bf16.msra.mxu0 0
        %2349 = vmatprep.subr.bf16.mxu0 0
        %2350 = vmatpush1.bf16.msra.mxu0 0
        %2351 = vmatprep.mubr.bf16.mxu0 0
        %2352 = vmatmul.mubr.bf16.gmra.mrb[0].mxu0 %v2272
        %v2353 = vpop.f32.mrb[0].mxu0
        %v2354 = vadd.f32 %v2256, %v2353
        %v2355 = vpop.f32.mrb[0].mxu0
        %v2356 = vpop.f32.mrb[0].mxu0
        %v2357 = vadd.f32 %v2256, %v2356
        %v2358 = vpop.f32.mrb[0].mxu0
        %2359 = vmatprep.mubr.bf16.mxu0 0
        %2360 = vmatmul.mubr.bf16.gmra.mrb[0].mxu0 %v2275
        %v2361 = vpop.f32.mrb[0].mxu0
        %v2362 = vadd.f32 %v2256, %v2361
        %v2363 = vpop.f32.mrb[0].mxu0
        %v2364 = vpop.f32.mrb[0].mxu0
        %v2365 = vadd.f32 %v2256, %v2364
        %v2366 = vpop.f32.mrb[0].mxu0
        %2367 = vmatprep.mubr.bf16.mxu0 0
        %2368 = vmatmul.mubr.bf16.gmra.mrb[0].mxu0 %v2278
        %v2369 = vpop.f32.mrb[0].mxu0
        %v2370 = vadd.f32 %v2256, %v2369
        %v2371 = vpop.f32.mrb[0].mxu0
        %v2372 = vpop.f32.mrb[0].mxu0
        %v2373 = vadd.f32 %v2256, %v2372
        %v2374 = vpop.f32.mrb[0].mxu0
        %2375 = vmatprep.mubr.bf16.mxu0 0
        %2376 = vmatmul.mubr.bf16.gmra.mrb[0].mxu0 %v2281
        %v2377 = vpop.f32.mrb[0].mxu0
        %v2378 = vadd.f32 %v2256, %v2377
        %v2379 = vpop.f32.mrb[0].mxu0
        %v2380 = vpop.f32.mrb[0].mxu0
        %v2381 = vadd.f32 %v2256, %v2380
        %v2382 = vpop.f32.mrb[0].mxu0
        %2383 = vmatprep.mubr.bf16.mxu0 0
        %2384 = vmatmul.mubr.bf16.gmra.mrb[0].mxu0 %v2284
        %v2385 = vpop.f32.mrb[0].mxu0
        %v2386 = vadd.f32 %v2256, %v2385
        %v2387 = vpop.f32.mrb[0].mxu0
        %v2388 = vpop.f32.mrb[0].mxu0
        %v2389 = vadd.f32 %v2256, %v2388
        %v2390 = vpop.f32.mrb[0].mxu0
        %2391 = vmatprep.mubr.bf16.mxu0 0
        %2392 = vmatmul.mubr.bf16.gmra.mrb[0].mxu0 %v2287
        %v2393 = vpop.f32.mrb[0].mxu0
        %v2394 = vadd.f32 %v2256, %v2393
        %v2395 = vpop.f32.mrb[0].mxu0
        %v2396 = vpop.f32.mrb[0].mxu0
        %v2397 = vadd.f32 %v2256, %v2396
        %v2398 = vpop.f32.mrb[0].mxu0
        %2399 = vmatprep.mubr.bf16.mxu0 0
        %2400 = vmatmul.mubr.bf16.gmra.mrb[0].mxu0 %v2290
        %v2401 = vpop.f32.mrb[0].mxu0
        %v2402 = vadd.f32 %v2256, %v2401
        %v2403 = vpop.f32.mrb[0].mxu0
        %v2404 = vpop.f32.mrb[0].mxu0
        %v2405 = vadd.f32 %v2256, %v2404
        %v2406 = vpop.f32.mrb[0].mxu0
        %2407 = vmatprep.mubr.bf16.mxu0 0
        %2408 = vmatmul.mubr.bf16.gmra.mrb[0].mxu0 %v2293
        %v2409 = vpop.f32.mrb[0].mxu0
        %v2410 = vadd.f32 %v2256, %v2409
        %v2411 = vpop.f32.mrb[0].mxu0
        %v2412 = vpop.f32.mrb[0].mxu0
        %v2413 = vadd.f32 %v2256, %v2412
        %v2414 = vpop.f32.mrb[0].mxu0
        %2415 = vmatprep.mubr.bf16.mxu0 0
        %2416 = vmatmul.mubr.bf16.gmra.mrb[0].mxu0 %v2296
        %v2417 = vpop.f32.mrb[0].mxu0
        %v2418 = vadd.f32 %v2256, %v2417
        %v2419 = vpop.f32.mrb[0].mxu0
        %v2420 = vpop.f32.mrb[0].mxu0
        %v2421 = vadd.f32 %v2256, %v2420
        %v2422 = vpop.f32.mrb[0].mxu0
        %2423 = vmatprep.mubr.bf16.mxu0 0
        %2424 = vmatmul.mubr.bf16.gmra.mrb[0].mxu0 %v2299
        %v2425 = vpop.f32.mrb[0].mxu0
        %v2426 = vadd.f32 %v2256, %v2425
        %v2427 = vpop.f32.mrb[0].mxu0
        %v2428 = vpop.f32.mrb[0].mxu0
        %v2429 = vadd.f32 %v2256, %v2428
        %v2430 = vpop.f32.mrb[0].mxu0
        %2431 = vmatprep.mubr.bf16.mxu0 0
        %2432 = vmatmul.mubr.bf16.gmra.mrb[0].mxu0 %v2302
        %v2433 = vpop.f32.mrb[0].mxu0
        %v2434 = vadd.f32 %v2256, %v2433
        %v2435 = vpop.f32.mrb[0].mxu0
        %v2436 = vpop.f32.mrb[0].mxu0
        %v2437 = vadd.f32 %v2256, %v2436
        %v2438 = vpop.f32.mrb[0].mxu0
        %2439 = vmatprep.mubr.bf16.mxu0 0
        %2440 = vmatmul.mubr.bf16.gmra.mrb[0].mxu0 %v2305
        %v2441 = vpop.f32.mrb[0].mxu0
        %v2442 = vadd.f32 %v2256, %v2441
        %v2443 = vpop.f32.mrb[0].mxu0
        %v2444 = vpop.f32.mrb[0].mxu0
        %v2445 = vadd.f32 %v2256, %v2444
        %v2446 = vpop.f32.mrb[0].mxu0
        %2447 = vmatprep.mubr.bf16.mxu0 0
        %2448 = vmatmul.mubr.bf16.gmra.mrb[0].mxu0 %v2308
        %v2449 = vpop.f32.mrb[0].mxu0
        %v2450 = vadd.f32 %v2256, %v2449
        %v2451 = vpop.f32.mrb[0].mxu0
        %v2452 = vpop.f32.mrb[0].mxu0
        %v2453 = vadd.f32 %v2256, %v2452
        %v2454 = vpop.f32.mrb[0].mxu0
        %2455 = vmatprep.mubr.bf16.mxu0 0
        %2456 = vmatmul.mubr.bf16.gmra.mrb[0].mxu0 %v2311
        %v2457 = vpop.f32.mrb[0].mxu0
        %v2458 = vadd.f32 %v2256, %v2457
        %v2459 = vpop.f32.mrb[0].mxu0
        %v2460 = vpop.f32.mrb[0].mxu0
        %v2461 = vadd.f32 %v2256, %v2460
        %v2462 = vpop.f32.mrb[0].mxu0
        %2463 = vmatprep.mubr.bf16.mxu0 0
        %2464 = vmatmul.mubr.bf16.gmra.mrb[0].mxu0 %v2314
        %v2465 = vpop.f32.mrb[0].mxu0
        %v2466 = vadd.f32 %v2256, %v2465
        %v2467 = vpop.f32.mrb[0].mxu0
        %v2468 = vpop.f32.mrb[0].mxu0
        %v2469 = vadd.f32 %v2256, %v2468
        %v2470 = vpop.f32.mrb[0].mxu0
        %2471 = vmatprep.mubr.bf16.mxu0 0
        %2472 = vmatmul.mubr.bf16.gmra.mrb[0].mxu0 %v2317
        %v2473 = vpop.f32.mrb[0].mxu0
        %v2474 = vadd.f32 %v2256, %v2473
        %v2475 = vpop.f32.mrb[0].mxu0
        %v2476 = vpop.f32.mrb[0].mxu0
        %v2477 = vadd.f32 %v2256, %v2476
        %v2478 = vpop.f32.mrb[0].mxu0
        %2479 = vdwg.mxu0
        %v2480 = vxor.u32 %v2354, 2147483648
        %v2481 = vxor.u32 %v2357, 2147483648
        %v2482 = vxor.u32 %v2362, 2147483648
        %v2483 = vxor.u32 %v2365, 2147483648
        %v2484 = vxor.u32 %v2370, 2147483648
        %v2485 = vxor.u32 %v2373, 2147483648
        %v2486 = vxor.u32 %v2378, 2147483648
        %v2487 = vxor.u32 %v2381, 2147483648
        %v2488 = vxor.u32 %v2386, 2147483648
        %v2489 = vxor.u32 %v2389, 2147483648
        %v2490 = vxor.u32 %v2394, 2147483648
        %v2491 = vxor.u32 %v2397, 2147483648
        %v2492 = vxor.u32 %v2402, 2147483648
        %v2493 = vxor.u32 %v2405, 2147483648
        %v2494 = vxor.u32 %v2410, 2147483648
        %v2495 = vxor.u32 %v2413, 2147483648
        %v2496 = vxor.u32 %v2418, 2147483648
        %v2497 = vxor.u32 %v2421, 2147483648
        %v2498 = vxor.u32 %v2426, 2147483648
        %v2499 = vxor.u32 %v2429, 2147483648
        %v2500 = vxor.u32 %v2434, 2147483648
        %v2501 = vxor.u32 %v2437, 2147483648
        %v2502 = vxor.u32 %v2442, 2147483648
        %v2503 = vxor.u32 %v2445, 2147483648
        %v2504 = vxor.u32 %v2450, 2147483648
        %v2505 = vxor.u32 %v2453, 2147483648
        %v2506 = vxor.u32 %v2458, 2147483648
        %v2507 = vxor.u32 %v2461, 2147483648
        %v2508 = vxor.u32 %v2466, 2147483648
        %v2509 = vxor.u32 %v2469, 2147483648
        %v2510 = vxor.u32 %v2474, 2147483648
        %v2511 = vxor.u32 %v2477, 2147483648
        %v2512 = vmul.f32 %v2480, 1.442695
        %v2513 = vpow.pop %v2512
        %v2514 = vmul.f32 %v2481, 1.442695
        %v2515 = vpow.pop %v2514
        %v2516 = vmul.f32 %v2482, 1.442695
        %v2517 = vpow.pop %v2516
        %v2518 = vmul.f32 %v2483, 1.442695
        %v2519 = vpow.pop %v2518
        %v2520 = vmul.f32 %v2484, 1.442695
        %v2521 = vpow.pop %v2520
        %v2522 = vmul.f32 %v2485, 1.442695
        %v2523 = vpow.pop %v2522
        %v2524 = vmul.f32 %v2486, 1.442695
        %v2525 = vpow.pop %v2524
        %v2526 = vmul.f32 %v2487, 1.442695
        %v2527 = vpow.pop %v2526
        %v2528 = vmul.f32 %v2488, 1.442695
        %v2529 = vpow.pop %v2528
        %v2530 = vmul.f32 %v2489, 1.442695
        %v2531 = vpow.pop %v2530
        %v2532 = vmul.f32 %v2490, 1.442695
        %v2533 = vpow.pop %v2532
        %v2534 = vmul.f32 %v2491, 1.442695
        %v2535 = vpow.pop %v2534
        %v2536 = vmul.f32 %v2492, 1.442695
        %v2537 = vpow.pop %v2536
        %v2538 = vmul.f32 %v2493, 1.442695
        %v2539 = vpow.pop %v2538
        %v2540 = vmul.f32 %v2494, 1.442695
        %v2541 = vpow.pop %v2540
        %v2542 = vmul.f32 %v2495, 1.442695
        %v2543 = vpow.pop %v2542
        %v2544 = vmul.f32 %v2496, 1.442695
        %v2545 = vpow.pop %v2544
        %v2546 = vmul.f32 %v2497, 1.442695
        %v2547 = vpow.pop %v2546
        %v2548 = vmul.f32 %v2498, 1.442695
        %v2549 = vpow.pop %v2548
        %v2550 = vmul.f32 %v2499, 1.442695
        %v2551 = vpow.pop %v2550
        %v2552 = vmul.f32 %v2500, 1.442695
        %v2553 = vpow.pop %v2552
        %v2554 = vmul.f32 %v2501, 1.442695
        %v2555 = vpow.pop %v2554
        %v2556 = vmul.f32 %v2502, 1.442695
        %v2557 = vpow.pop %v2556
        %v2558 = vmul.f32 %v2503, 1.442695
        %v2559 = vpow.pop %v2558
        %v2560 = vmul.f32 %v2504, 1.442695
        %v2561 = vpow.pop %v2560
        %v2562 = vmul.f32 %v2505, 1.442695
        %v2563 = vpow.pop %v2562
        %v2564 = vmul.f32 %v2506, 1.442695
        %v2565 = vpow.pop %v2564
        %v2566 = vmul.f32 %v2507, 1.442695
        %v2567 = vpow.pop %v2566
        %v2568 = vmul.f32 %v2508, 1.442695
        %v2569 = vpow.pop %v2568
        %v2570 = vmul.f32 %v2509, 1.442695
        %v2571 = vpow.pop %v2570
        %v2572 = vmul.f32 %v2510, 1.442695
        %v2573 = vpow.pop %v2572
        %v2574 = vmul.f32 %v2511, 1.442695
        %v2575 = vpow.pop %v2574
        %v2576 = vadd.f32 %v2513, 1.0
        %v2577 = vadd.f32 %v2515, 1.0
        %v2578 = vadd.f32 %v2517, 1.0
        %v2579 = vadd.f32 %v2519, 1.0
        %v2580 = vadd.f32 %v2521, 1.0
        %v2581 = vadd.f32 %v2523, 1.0
        %v2582 = vadd.f32 %v2525, 1.0
        %v2583 = vadd.f32 %v2527, 1.0
        %v2584 = vadd.f32 %v2529, 1.0
        %v2585 = vadd.f32 %v2531, 1.0
        %v2586 = vadd.f32 %v2533, 1.0
        %v2587 = vadd.f32 %v2535, 1.0
        %v2588 = vadd.f32 %v2537, 1.0
        %v2589 = vadd.f32 %v2539, 1.0
        %v2590 = vadd.f32 %v2541, 1.0
        %v2591 = vadd.f32 %v2543, 1.0
        %v2592 = vadd.f32 %v2545, 1.0
        %v2593 = vadd.f32 %v2547, 1.0
        %v2594 = vadd.f32 %v2549, 1.0
        %v2595 = vadd.f32 %v2551, 1.0
        %v2596 = vadd.f32 %v2553, 1.0
        %v2597 = vadd.f32 %v2555, 1.0
        %v2598 = vadd.f32 %v2557, 1.0
        %v2599 = vadd.f32 %v2559, 1.0
        %v2600 = vadd.f32 %v2561, 1.0
        %v2601 = vadd.f32 %v2563, 1.0
        %v2602 = vadd.f32 %v2565, 1.0
        %v2603 = vadd.f32 %v2567, 1.0
        %v2604 = vadd.f32 %v2569, 1.0
        %v2605 = vadd.f32 %v2571, 1.0
        %v2606 = vadd.f32 %v2573, 1.0
        %v2607 = vadd.f32 %v2575, 1.0
        %v2608 = vrcp.pop %v2576
        %v2609 = vmul.f32 1.0, %v2608
        %v2610 = vrcp.pop %v2577
        %v2611 = vmul.f32 1.0, %v2610
        %v2612 = vrcp.pop %v2578
        %v2613 = vmul.f32 1.0, %v2612
        %v2614 = vrcp.pop %v2579
        %v2615 = vmul.f32 1.0, %v2614
        %v2616 = vrcp.pop %v2580
        %v2617 = vmul.f32 1.0, %v2616
        %v2618 = vrcp.pop %v2581
        %v2619 = vmul.f32 1.0, %v2618
        %v2620 = vrcp.pop %v2582
        %v2621 = vmul.f32 1.0, %v2620
        %v2622 = vrcp.pop %v2583
        %v2623 = vmul.f32 1.0, %v2622
        %v2624 = vrcp.pop %v2584
        %v2625 = vmul.f32 1.0, %v2624
        %v2626 = vrcp.pop %v2585
        %v2627 = vmul.f32 1.0, %v2626
        %v2628 = vrcp.pop %v2586
        %v2629 = vmul.f32 1.0, %v2628
        %v2630 = vrcp.pop %v2587
        %v2631 = vmul.f32 1.0, %v2630
        %v2632 = vrcp.pop %v2588
        %v2633 = vmul.f32 1.0, %v2632
        %v2634 = vrcp.pop %v2589
        %v2635 = vmul.f32 1.0, %v2634
        %v2636 = vrcp.pop %v2590
        %v2637 = vmul.f32 1.0, %v2636
        %v2638 = vrcp.pop %v2591
        %v2639 = vmul.f32 1.0, %v2638
        %v2640 = vrcp.pop %v2592
        %v2641 = vmul.f32 1.0, %v2640
        %v2642 = vrcp.pop %v2593
        %v2643 = vmul.f32 1.0, %v2642
        %v2644 = vrcp.pop %v2594
        %v2645 = vmul.f32 1.0, %v2644
        %v2646 = vrcp.pop %v2595
        %v2647 = vmul.f32 1.0, %v2646
        %v2648 = vrcp.pop %v2596
        %v2649 = vmul.f32 1.0, %v2648
        %v2650 = vrcp.pop %v2597
        %v2651 = vmul.f32 1.0, %v2650
        %v2652 = vrcp.pop %v2598
        %v2653 = vmul.f32 1.0, %v2652
        %v2654 = vrcp.pop %v2599
        %v2655 = vmul.f32 1.0, %v2654
        %v2656 = vrcp.pop %v2600
        %v2657 = vmul.f32 1.0, %v2656
        %v2658 = vrcp.pop %v2601
        %v2659 = vmul.f32 1.0, %v2658
        %v2660 = vrcp.pop %v2602
        %v2661 = vmul.f32 1.0, %v2660
        %v2662 = vrcp.pop %v2603
        %v2663 = vmul.f32 1.0, %v2662
        %v2664 = vrcp.pop %v2604
        %v2665 = vmul.f32 1.0, %v2664
        %v2666 = vrcp.pop %v2605
        %v2667 = vmul.f32 1.0, %v2666
        %v2668 = vrcp.pop %v2606
        %v2669 = vmul.f32 1.0, %v2668
        %v2670 = vrcp.pop %v2607
        %v2671 = vmul.f32 1.0, %v2670
        %v2672 = vmul.f32 %v2354, %v2609
        %v2673 = vmul.f32 %v2357, %v2611
        %v2674 = vmul.f32 %v2362, %v2613
        %v2675 = vmul.f32 %v2365, %v2615
        %v2676 = vmul.f32 %v2370, %v2617
        %v2677 = vmul.f32 %v2373, %v2619
        %v2678 = vmul.f32 %v2378, %v2621
        %v2679 = vmul.f32 %v2381, %v2623
        %v2680 = vmul.f32 %v2386, %v2625
        %v2681 = vmul.f32 %v2389, %v2627
        %v2682 = vmul.f32 %v2394, %v2629
        %v2683 = vmul.f32 %v2397, %v2631
        %v2684 = vmul.f32 %v2402, %v2633
        %v2685 = vmul.f32 %v2405, %v2635
        %v2686 = vmul.f32 %v2410, %v2637
        %v2687 = vmul.f32 %v2413, %v2639
        %v2688 = vmul.f32 %v2418, %v2641
        %v2689 = vmul.f32 %v2421, %v2643
        %v2690 = vmul.f32 %v2426, %v2645
        %v2691 = vmul.f32 %v2429, %v2647
        %v2692 = vmul.f32 %v2434, %v2649
        %v2693 = vmul.f32 %v2437, %v2651
        %v2694 = vmul.f32 %v2442, %v2653
        %v2695 = vmul.f32 %v2445, %v2655
        %v2696 = vmul.f32 %v2450, %v2657
        %v2697 = vmul.f32 %v2453, %v2659
        %v2698 = vmul.f32 %v2458, %v2661
        %v2699 = vmul.f32 %v2461, %v2663
        %v2700 = vmul.f32 %v2466, %v2665
        %v2701 = vmul.f32 %v2469, %v2667
        %v2702 = vmul.f32 %v2474, %v2669
        %v2703 = vmul.f32 %v2477, %v2671
        %vm2704 = vcmask 523264
        %2705 = vst.msk [vmem:[%s231] sm:$0xff] %vm2704, %v2672
        %2706 = vst.msk [vmem:[%s231 + $0x8] sm:$0xff] %vm2704, %v2673
        %2707 = vst.msk [vmem:[%s231 + $0x10] sm:$0xff] %vm2704, %v2674
        %2708 = vst.msk [vmem:[%s231 + $0x18] sm:$0xff] %vm2704, %v2675
        %2709 = vst.msk [vmem:[%s231 + $0x20] sm:$0xff] %vm2704, %v2676
        %2710 = vst.msk [vmem:[%s231 + $0x28] sm:$0xff] %vm2704, %v2677
        %2711 = vst.msk [vmem:[%s231 + $0x30] sm:$0xff] %vm2704, %v2678
        %2712 = vst.msk [vmem:[%s231 + $0x38] sm:$0xff] %vm2704, %v2679
        %2713 = vst.msk [vmem:[%s231 + $0x40] sm:$0xff] %vm2704, %v2680
        %2714 = vst.msk [vmem:[%s231 + $0x48] sm:$0xff] %vm2704, %v2681
        %2715 = vst.msk [vmem:[%s231 + $0x50] sm:$0xff] %vm2704, %v2682
        %2716 = vst.msk [vmem:[%s231 + $0x58] sm:$0xff] %vm2704, %v2683
        %2717 = vst.msk [vmem:[%s231 + $0x60] sm:$0xff] %vm2704, %v2684
        %2718 = vst.msk [vmem:[%s231 + $0x68] sm:$0xff] %vm2704, %v2685
        %2719 = vst.msk [vmem:[%s231 + $0x70] sm:$0xff] %vm2704, %v2686
        %2720 = vst.msk [vmem:[%s231 + $0x78] sm:$0xff] %vm2704, %v2687
        %2721 = vst.msk [vmem:[%s231 + $0x80] sm:$0xff] %vm2704, %v2688
        %2722 = vst.msk [vmem:[%s231 + $0x88] sm:$0xff] %vm2704, %v2689
        %2723 = vst.msk [vmem:[%s231 + $0x90] sm:$0xff] %vm2704, %v2690
        %2724 = vst.msk [vmem:[%s231 + $0x98] sm:$0xff] %vm2704, %v2691
        %2725 = vst.msk [vmem:[%s231 + $0xa0] sm:$0xff] %vm2704, %v2692
        %2726 = vst.msk [vmem:[%s231 + $0xa8] sm:$0xff] %vm2704, %v2693
        %2727 = vst.msk [vmem:[%s231 + $0xb0] sm:$0xff] %vm2704, %v2694
        %2728 = vst.msk [vmem:[%s231 + $0xb8] sm:$0xff] %vm2704, %v2695
        %2729 = vst.msk [vmem:[%s231 + $0xc0] sm:$0xff] %vm2704, %v2696
        %2730 = vst.msk [vmem:[%s231 + $0xc8] sm:$0xff] %vm2704, %v2697
        %2731 = vst.msk [vmem:[%s231 + $0xd0] sm:$0xff] %vm2704, %v2698
        %2732 = vst.msk [vmem:[%s231 + $0xd8] sm:$0xff] %vm2704, %v2699
        %2733 = vst.msk [vmem:[%s231 + $0xe0] sm:$0xff] %vm2704, %v2700
        %2734 = vst.msk [vmem:[%s231 + $0xe8] sm:$0xff] %vm2704, %v2701
        %2735 = vst.msk [vmem:[%s231 + $0xf0] sm:$0xff] %vm2704, %v2702
        %2736 = vst.msk [vmem:[%s231 + $0xf8] sm:$0xff] %vm2704, %v2703
        %s2737 = sand.u32 %s151, 1
        %s2738 = scalar_lea.sflag [#allocation3], %s2737
        %s2739 = sand.u32 %s151, 1
        %s2740 = smul.addr %s2739, 256
        %s2741 = scalar_lea.vmem [#allocation2], %s2740
        // Predicated region
        $region41: #{tpu_custom_call.1} parent=39 // pred_check
          %p2742 = pneg %p161
        $region42: #{tpu_custom_call.1} parent=39 // pred_check_branch
          %2744 = sbr.rel (%p2742) target = $region44
        $region43: #{tpu_custom_call.1} parent=39 // pred_region
          %s2745 = smul.u32 16, %s24
          %s2747 = ssub.s32 4096, 4096
          %2748 = vsyncadd %s2738, %s2747
          %s2749 = smul.addr %s2745, 2
          %s2750 = smul.addr %s23, 32
          %s2751 = sadd.s32 %s2749, %s2750
          %s2752 = smul.addr %s2751, 128
          %s2753 = scalar_lea.hbm %s5, %s2752
          %s2754 = sshll.u32 %s2741, 4
          %s2755 = int_to_ptr.vmem [resolvable:$true] %s2754
          %2760 = dma.vmem_to_hbm [thread:$0]  %s2755, 4096, %s2753, %s2738, 128, 128, 8
        $region44: #{tpu_custom_call.1} parent=39 // pred_fallthru
          _
      $region40: #{tpu_custom_call.1} parent=5 // pred_fallthru
        _
      %p2761 = scmp.le.s32.totalorder 2, %s14
      // Predicated region
      $region45: #{tpu_custom_call.1} parent=5 // pred_check
        %p2762 = pneg %p2761
      $region46: #{tpu_custom_call.1} parent=5 // pred_check_branch
        %2764 = sbr.rel (%p2762) target = $region48
      $region47: #{tpu_custom_call.1} parent=5 // pred_region
        %s2765 = ssub.s32 %s14, 2
        // Predicated region
        $region49: #{tpu_custom_call.1} parent=47 // pred_check
          %p2766 = pneg %p167
        $region50: #{tpu_custom_call.1} parent=47 // pred_check_branch
          %2768 = sbr.rel (%p2766) target = $region52
        $region51: #{tpu_custom_call.1} parent=47 // pred_region
          %s2769 = sand.u32 %s152, 1
          %s2770 = scalar_lea.sflag [#allocation3], %s2769
          %s2771 = sand.u32 %s152, 1
          %s2772 = smul.addr %s2771, 256
          %s2773 = scalar_lea.vmem [#allocation2], %s2772
          %2774 = dma.done %s2770, 4096
        $region52: #{tpu_custom_call.1} parent=47 // pred_fallthru
          _
      $region48: #{tpu_custom_call.1} parent=5 // pred_fallthru
        _
    $region6: #{tpu_custom_call.1} parent=1 // loop_footer
      %s18 = sadd.s32 1, %s14
    $region7: #{tpu_custom_call.1} parent=1 // loop_footer_branch
      %13 = sbr.rel target = $region3
    $region8: #{tpu_custom_call.1} parent=1 // loop_exit
      _
    %2775 = vsyncpa [#allocation3], 1
    %s2776 = scalar_lea.sflag [#allocation3], 1
    %2777 = vsyncpa %s2776, 1

</llo_original>
